<compile_context>
chip_gen: v6e
topology: v6e:2x2x1
jax: 0.10.0
libtpu: 0.0.40
codegen_flags: <defaults>
</compile_context>

<pallas_src>
import functools

import jax
import jax.numpy as jnp
from jax import lax
from jax.experimental import pallas as pl
from jax.experimental.pallas import tpu as pltpu

_LANE = 128
_SUBLANE = 8
_BLOCK_BYTES_CAP = 2 * 1024 * 1024      # per-operand block cap (portable v5e/v6e/v7x)
_VMEM_LIMIT = 32 * 1024 * 1024


# ---------------------------------------------------------------------------
# helpers
# ---------------------------------------------------------------------------
def _choose_tile_rows(H, W, max_step):
    """Largest TH that divides H, is a multiple of max(8, max_step) and fits the cap."""
    align = max(_SUBLANE, max_step)
    w_pad = ((W + _LANE - 1) // _LANE) * _LANE
    best = None
    th = align
    while th <= H:
        if H % th == 0 and th * w_pad * 4 <= _BLOCK_BYTES_CAP:
            best = th
        th += align
    # TODO(synk): if H has no aligned divisor we fall back to one row-tile per image.
    return best if best is not None else H


def _sum11(x):
    # full reduction of a 2-D tile, kept as a (1, 1) array (no scalar extraction).
    return jnp.sum(x, keepdims=True)


def _safe_div(num, den):
    ok = den != 0
    return jnp.where(ok, num / jnp.where(ok, den, 1.0), 0.0)


# ---------------------------------------------------------------------------
# pass 1: per-image sums for the closed-form scale & shift (2x2 least squares)
# ---------------------------------------------------------------------------
def _normal_eq_kernel(p_ref, t_ref, m_ref, out_ref):
    h = pl.program_id(1)
    p = p_ref[0].astype(jnp.float32)
    t = t_ref[0].astype(jnp.float32)
    m = m_ref[0].astype(jnp.float32)
    mp = m * p
    row = jnp.concatenate(
        [_sum11(mp * p), _sum11(mp), _sum11(m), _sum11(mp * t), _sum11(m * t)],
        axis=1)                                        # (1, 5)

    @pl.when(h == 0)
    def _():
        out_ref[...] = jnp.zeros_like(out_ref)

    out_ref[0, 0:1, 0:5] += row


def _normal_eq_sums(p, t, m, TH):
    B, H, W = p.shape
    nH = H // TH
    out = pl.pallas_call(
        _normal_eq_kernel,
        out_shape=jax.ShapeDtypeStruct((B, _SUBLANE, _LANE), jnp.float32),
        grid=(B, nH),
        in_specs=[pl.BlockSpec((1, TH, W), lambda b, h: (b, h, 0))] * 3,
        out_specs=pl.BlockSpec((1, _SUBLANE, _LANE), lambda b, h: (b, 0, 0)),
        compiler_params=pltpu.CompilerParams(
            dimension_semantics=("parallel", "arbitrary"),
            vmem_limit_bytes=_VMEM_LIMIT),
    )(p, t, m)
    return out[:, 0, :5]                               # (B, 5)


# ---------------------------------------------------------------------------
# pass 2: fused masked MSE + multi-scale gradient loss sums
#   output lanes (per batch, summed over batch on host):
#     [0]=sum(m*res^2)  [1]=sum(m)  [2:2+S]=grad_sum_s  [2+S:2+2S]=subsampled mask sum_s
# ---------------------------------------------------------------------------
def _fused_loss_kernel(p_ref, t_ref, m_ref, sc_ref, sh_ref, out_ref,
                       carry_d, carry_m, *, TH, W, scales, max_step, multi_tile):
    h = pl.program_id(1)
    p = p_ref[0].astype(jnp.float32)
    t = t_ref[0].astype(jnp.float32)
    m = m_ref[0].astype(jnp.float32)
    scale = sc_ref[0]                                  # (1, 1) -> broadcasts
    shift = sh_ref[0]

    pssi = scale * p + shift                           # recomputed in VMEM, never stored
    res = pssi - t
    diff = m * res                                     # masked residual (MSE + gradients)

    vals = [_sum11(diff * res),                        # sum(m * res * res)
            _sum11(m)]                                 # sum(m)

    rows = lax.broadcasted_iota(jnp.int32, (TH, W), 0)
    cols = lax.broadcasted_iota(jnp.int32, (TH, W), 1)

    grad_vals, msub_vals = [], []
    for s_idx in range(scales):
        step = 2 ** s_idx
        sub_sel = None
        if step > 1:
            sub_sel = ((rows % step) == 0) & ((cols % step) == 0)
            msub_vals.append(_sum11(jnp.where(sub_sel, m, 0.0)))
        else:
            msub_vals.append(_sum11(m))

        g = jnp.zeros((1, 1), jnp.float32)
        if step < W:                                   # horizontal gradient
            gx = jnp.abs(diff[:, step:] - diff[:, :-step]) * (m[:, step:] * m[:, :-step])
            if sub_sel is not None:
                gx = jnp.where(sub_sel[:, :-step], gx, 0.0)
            g = g + _sum11(gx)
        if step < TH:                                  # vertical gradient (within the tile)
            gy = jnp.abs(diff[step:, :] - diff[:-step, :]) * (m[step:, :] * m[:-step, :])
            if sub_sel is not None:
                gy = jnp.where(sub_sel[:-step, :], gy, 0.0)
            g = g + _sum11(gy)
        grad_vals.append(g)

    nout = 2 + 2 * scales
    row_local = jnp.concatenate(vals + grad_vals + msub_vals, axis=1)   # (1, nout)

    @pl.when(h == 0)
    def _():
        out_ref[...] = jnp.zeros_like(out_ref)

    out_ref[0, 0:1, 0:nout] += row_local

    if multi_tile and scales > 0:
        # vertical-gradient pairs that straddle the row-tile seam: connect the last
        # subsampled row of the previous tile (VMEM carry) to row 0 of this tile.
        @pl.when(h > 0)
        def _():
            d0 = diff[0:1, :]
            m0 = m[0:1, :]
            crow = cols[0:1, :]
            seam = []
            for s_idx in range(scales):
                step = 2 ** s_idx
                idx = max_step - step
                dp = carry_d[idx:idx + 1, :]
                mp = carry_m[idx:idx + 1, :]
                gseam = mp * m0 * jnp.abs(d0 - dp)
                if step > 1:
                    gseam = jnp.where((crow % step) == 0, gseam, 0.0)
                seam.append(_sum11(gseam))
            out_ref[0, 0:1, 2:2 + scales] += jnp.concatenate(seam, axis=1)

        carry_d[...] = diff[TH - max_step:, :]
        carry_m[...] = m[TH - max_step:, :]


def _fused_data_and_grad_sums(p, t, m, scale, shift, TH, scales):
    B, H, W = p.shape
    nH = H // TH
    max_step = 2 ** (scales - 1) if scales > 0 else 1
    multi_tile = nH > 1
    kernel = functools.partial(_fused_loss_kernel, TH=TH, W=W, scales=scales,
                               max_step=max_step, multi_tile=multi_tile)
    out = pl.pallas_call(
        kernel,
        out_shape=jax.ShapeDtypeStruct((B, _SUBLANE, _LANE), jnp.float32),
        grid=(B, nH),
        in_specs=[pl.BlockSpec((1, TH, W), lambda b, h: (b, h, 0))] * 3
                 + [pl.BlockSpec((1, 1, 1), lambda b, h: (b, 0, 0))] * 2,
        out_specs=pl.BlockSpec((1, _SUBLANE, _LANE), lambda b, h: (b, 0, 0)),
        scratch_shapes=[pltpu.VMEM((max_step, W), jnp.float32),
                        pltpu.VMEM((max_step, W), jnp.float32)],
        compiler_params=pltpu.CompilerParams(
            dimension_semantics=("parallel", "arbitrary"),
            vmem_limit_bytes=_VMEM_LIMIT),
    )(p, t, m, scale, shift)
    return jnp.sum(out[:, 0, :2 + 2 * scales], axis=0)  # (2 + 2*scales,)


# ---------------------------------------------------------------------------
# forward
# ---------------------------------------------------------------------------
@functools.partial(jax.jit, static_argnames=("alpha", "scales", "tile_rows"))
def scale_and_shift_invariant_loss(prediction, target, mask, alpha=0.5, scales=4,
                                   tile_rows=None):
    # TODO(synk): only the default reduction='batch-based' path is implemented.
    prediction = prediction.astype(jnp.float32)
    target = target.astype(jnp.float32)
    mask = mask.astype(jnp.float32)
    B, H, W = prediction.shape

    n_scales = scales if alpha > 0 else 0
    max_step = 2 ** (n_scales - 1) if n_scales > 0 else 1
    TH = tile_rows if tile_rows is not None else _choose_tile_rows(H, W, max_step)
    if H % TH != 0 or (H // TH > 1 and TH % max(max_step, _SUBLANE) != 0):
        TH = H                                          # safe fallback: single row tile

    # pass 1: closed-form per-image scale & shift
    s = _normal_eq_sums(prediction, target, mask, TH)
    a00, a01, a11, b0, b1 = (s[:, i] for i in range(5))
    det = a00 * a11 - a01 * a01
    ok = det != 0
    safe_det = jnp.where(ok, det, 1.0)
    scale = jnp.where(ok, (a11 * b0 - a01 * b1) / safe_det, 0.0)
    shift = jnp.where(ok, (-a01 * b0 + a00 * b1) / safe_det, 0.0)

    # pass 2: fused masked MSE + multi-scale gradient sums (pssi recomputed in-kernel)
    v = _fused_data_and_grad_sums(prediction, target, mask,
                                  scale.reshape(B, 1, 1), shift.reshape(B, 1, 1),
                                  TH, n_scales)
    total = _safe_div(v[0], 2.0 * v[1])
    if alpha > 0 and n_scales > 0:
        reg = jnp.sum(_safe_div(v[2:2 + n_scales], v[2 + n_scales:2 + 2 * n_scales]))
        total = total + alpha * reg
    return total


# ---------------------------------------------------------------------------
# pure-JAX reference (mirrors the PyTorch module semantics)
# ---------------------------------------------------------------------------
def _ref_loss(prediction, target, mask, alpha=0.5, scales=4):
    a00 = jnp.sum(mask * prediction * prediction, (1, 2))
    a01 = jnp.sum(mask * prediction, (1, 2))
    a11 = jnp.sum(mask, (1, 2))
    b0 = jnp.sum(mask * prediction * target, (1, 2))
    b1 = jnp.sum(mask * target, (1, 2))
    det = a00 * a11 - a01 * a01
    valid = det != 0
    safe_det = jnp.where(valid, det, 1.0)
    x0 = jnp.where(valid, (a11 * b0 - a01 * b1) / safe_det, 0.0)
    x1 = jnp.where(valid, (-a01 * b0 + a00 * b1) / safe_det, 0.0)
    pssi = x0[:, None, None] * prediction + x1[:, None, None]

    res = pssi - target
    total = _safe_div(jnp.sum(jnp.sum(mask * res * res, (1, 2))),
                      jnp.sum(2.0 * jnp.sum(mask, (1, 2))))
    if alpha > 0:
        reg = 0.0
        for s in range(scales):
            step = 2 ** s
            p, t, m = (x[:, ::step, ::step] for x in (pssi, target, mask))
            diff = m * (p - t)
            gx = (m[:, :, 1:] * m[:, :, :-1]) * jnp.abs(diff[:, :, 1:] - diff[:, :, :-1])
            gy = (m[:, 1:, :] * m[:, :-1, :]) * jnp.abs(diff[:, 1:, :] - diff[:, :-1, :])
            il = jnp.sum(gx, (1, 2)) + jnp.sum(gy, (1, 2))
            reg = reg + _safe_div(jnp.sum(il), jnp.sum(jnp.sum(m, (1, 2))))
        total = total + alpha * reg
    return total


if __name__ == "__main__":
    key = jax.random.PRNGKey(0)
    k1, k2, k3 = jax.random.split(key, 3)
    B, H, W = 2, 32, 32
    prediction = jax.random.normal(k1, (B, H, W), dtype=jnp.float32)
    target = jax.random.normal(k2, (B, H, W), dtype=jnp.float32)
    mask = (jax.random.uniform(k3, (B, H, W)) > 0.3).astype(jnp.float32)

    ref = _ref_loss(prediction, target, mask, alpha=0.5, scales=4)

    # default tiling (single row-tile at this size)
    out = scale_and_shift_invariant_loss(prediction, target, mask, alpha=0.5, scales=4)
    out = jax.block_until_ready(out)
    assert jnp.allclose(out, ref, rtol=1e-3, atol=1e-4), (out, ref)

    # forced multi-row-tile path (exercises pipelined accumulation + gradient seam carry)
    out_tiled = scale_and_shift_invariant_loss(prediction, target, mask,
                                               alpha=0.5, scales=4, tile_rows=8)
    out_tiled = jax.block_until_ready(out_tiled)
    assert jnp.allclose(out_tiled, ref, rtol=1e-3, atol=1e-4), (out_tiled, ref)

    print("KERNEL_OK")
</pallas_src>

<mosaic_0001>
module attributes {stable_mosaic.version = 11 : i64} {
  func.func @_normal_eq_kernel(%arg0: i32, %arg1: i32, %arg2: memref<1x32x32xf32, #tpu.memory_space<vmem>>, %arg3: memref<1x32x32xf32, #tpu.memory_space<vmem>>, %arg4: memref<1x32x32xf32, #tpu.memory_space<vmem>>, %arg5: memref<1x8x128xf32, #tpu.memory_space<vmem>>) attributes {dimension_semantics = [#tpu.dimension_semantics<parallel>, #tpu.dimension_semantics<arbitrary>], iteration_bounds = array<i64: 2, 1>, scalar_prefetch = 0 : i64, scratch_operands = 0 : i64, tpu.core_type = #tpu.core_type<tc>, window_params = [{transform_indices = @transform_0, window_bounds = array<i64: 1, 32, 32>}, {transform_indices = @transform_1, window_bounds = array<i64: 1, 32, 32>}, {transform_indices = @transform_2, window_bounds = array<i64: 1, 32, 32>}, {transform_indices = @transform_3, window_bounds = array<i64: 1, 8, 128>}]} {
    %c0 = arith.constant 0 : index
    %c0_0 = arith.constant 0 : index
    %c0_1 = arith.constant 0 : index
    %0 = vector.load %arg2[%c0, %c0_0, %c0_1] : memref<1x32x32xf32, #tpu.memory_space<vmem>>, vector<1x32x32xf32>
    %1 = vector.shape_cast %0 : vector<1x32x32xf32> to vector<32x32xf32>
    %c0_2 = arith.constant 0 : index
    %c0_3 = arith.constant 0 : index
    %c0_4 = arith.constant 0 : index
    %2 = vector.load %arg3[%c0_2, %c0_3, %c0_4] : memref<1x32x32xf32, #tpu.memory_space<vmem>>, vector<1x32x32xf32>
    %3 = vector.shape_cast %2 : vector<1x32x32xf32> to vector<32x32xf32>
    %c0_5 = arith.constant 0 : index
    %c0_6 = arith.constant 0 : index
    %c0_7 = arith.constant 0 : index
    %4 = vector.load %arg4[%c0_5, %c0_6, %c0_7] : memref<1x32x32xf32, #tpu.memory_space<vmem>>, vector<1x32x32xf32>
    %5 = vector.shape_cast %4 : vector<1x32x32xf32> to vector<32x32xf32>
    %6 = arith.mulf %5, %1 : vector<32x32xf32>
    %7 = arith.mulf %6, %1 : vector<32x32xf32>
    %8 = vector.shape_cast %7 : vector<32x32xf32> to vector<1x32x32xf32>
    %cst = arith.constant dense<0.000000e+00> : vector<1xf32>
    %9 = vector.multi_reduction <add>, %8, %cst [1, 2] : vector<1x32x32xf32> to vector<1xf32>
    %10 = vector.shape_cast %9 : vector<1xf32> to vector<1x1x1xf32>
    %11 = vector.extract %10[0, 0, 0] : f32 from vector<1x1x1xf32>
    %12 = vector.broadcast %11 : f32 to vector<1x1xf32>
    %13 = vector.shape_cast %6 : vector<32x32xf32> to vector<1x32x32xf32>
    %cst_8 = arith.constant dense<0.000000e+00> : vector<1xf32>
    %14 = vector.multi_reduction <add>, %13, %cst_8 [1, 2] : vector<1x32x32xf32> to vector<1xf32>
    %15 = vector.shape_cast %14 : vector<1xf32> to vector<1x1x1xf32>
    %16 = vector.extract %15[0, 0, 0] : f32 from vector<1x1x1xf32>
    %17 = vector.broadcast %16 : f32 to vector<1x1xf32>
    %18 = vector.shape_cast %5 : vector<32x32xf32> to vector<1x32x32xf32>
    %cst_9 = arith.constant dense<0.000000e+00> : vector<1xf32>
    %19 = vector.multi_reduction <add>, %18, %cst_9 [1, 2] : vector<1x32x32xf32> to vector<1xf32>
    %20 = vector.shape_cast %19 : vector<1xf32> to vector<1x1x1xf32>
    %21 = vector.extract %20[0, 0, 0] : f32 from vector<1x1x1xf32>
    %22 = vector.broadcast %21 : f32 to vector<1x1xf32>
    %23 = arith.mulf %6, %3 : vector<32x32xf32>
    %24 = vector.shape_cast %23 : vector<32x32xf32> to vector<1x32x32xf32>
    %cst_10 = arith.constant dense<0.000000e+00> : vector<1xf32>
    %25 = vector.multi_reduction <add>, %24, %cst_10 [1, 2] : vector<1x32x32xf32> to vector<1xf32>
    %26 = vector.shape_cast %25 : vector<1xf32> to vector<1x1x1xf32>
    %27 = vector.extract %26[0, 0, 0] : f32 from vector<1x1x1xf32>
    %28 = vector.broadcast %27 : f32 to vector<1x1xf32>
    %29 = arith.mulf %5, %3 : vector<32x32xf32>
    %30 = vector.shape_cast %29 : vector<32x32xf32> to vector<1x32x32xf32>
    %cst_11 = arith.constant dense<0.000000e+00> : vector<1xf32>
    %31 = vector.multi_reduction <add>, %30, %cst_11 [1, 2] : vector<1x32x32xf32> to vector<1xf32>
    %32 = vector.shape_cast %31 : vector<1xf32> to vector<1x1x1xf32>
    %33 = vector.extract %32[0, 0, 0] : f32 from vector<1x1x1xf32>
    %34 = vector.broadcast %33 : f32 to vector<1x1xf32>
    %35 = tpu.concatenate %12, %17, %22, %28, %34 in 1 : vector<1x1xf32>, vector<1x1xf32>, vector<1x1xf32>, vector<1x1xf32>, vector<1x1xf32> -> vector<1x5xf32>
    %c0_i32 = arith.constant 0 : i32
    %36 = arith.cmpi eq, %arg1, %c0_i32 : i32
    %37 = arith.extui %36 : i1 to i32
    %c0_i32_12 = arith.constant 0 : i32
    %38 = arith.cmpi ne, %37, %c0_i32_12 : i32
    scf.if %38 {
      %cst_19 = arith.constant 0.000000e+00 : f32
      %45 = vector.broadcast %cst_19 : f32 to vector<1x8x128xf32>
      %c0_20 = arith.constant 0 : index
      %c0_21 = arith.constant 0 : index
      %c0_22 = arith.constant 0 : index
      %46 = vector.load %arg5[%c0_20, %c0_21, %c0_22] : memref<1x8x128xf32, #tpu.memory_space<vmem>>, vector<1x8x128xf32>
      tpu.vector_store %arg5[%c0_20, %c0_21, %c0_22], %45 {strides = array<i32>} : memref<1x8x128xf32, #tpu.memory_space<vmem>>, vector<1x8x128xf32>,
    } else {
    }
    %c0_13 = arith.constant 0 : index
    %c0_14 = arith.constant 0 : index
    %c0_15 = arith.constant 0 : index
    %39 = vector.load %arg5[%c0_13, %c0_14, %c0_15] : memref<1x8x128xf32, #tpu.memory_space<vmem>>, vector<1x1x5xf32>
    %40 = vector.shape_cast %39 : vector<1x1x5xf32> to vector<1x5xf32>
    %41 = arith.addf %40, %35 : vector<1x5xf32>
    %c0_16 = arith.constant 0 : index
    %c0_17 = arith.constant 0 : index
    %c0_18 = arith.constant 0 : index
    %42 = vector.load %arg5[%c0_16, %c0_17, %c0_18] : memref<1x8x128xf32, #tpu.memory_space<vmem>>, vector<1x1x5xf32>
    %43 = vector.shape_cast %42 : vector<1x1x5xf32> to vector<1x5xf32>
    %44 = vector.shape_cast %41 : vector<1x5xf32> to vector<1x1x5xf32>
    tpu.vector_store %arg5[%c0_16, %c0_17, %c0_18], %44 {strides = array<i32>} : memref<1x8x128xf32, #tpu.memory_space<vmem>>, vector<1x1x5xf32>,
    return
  }
  func.func @transform_0(%arg0: i32, %arg1: i32) -> (i32, i32, i32) {
    %c0_i32 = arith.constant 0 : i32
    %c0_i32_0 = arith.constant 0 : i32
    return %arg0, %arg1, %c0_i32 : i32, i32, i32
  }
  func.func @transform_1(%arg0: i32, %arg1: i32) -> (i32, i32, i32) {
    %c0_i32 = arith.constant 0 : i32
    %c0_i32_0 = arith.constant 0 : i32
    return %arg0, %arg1, %c0_i32 : i32, i32, i32
  }
  func.func @transform_2(%arg0: i32, %arg1: i32) -> (i32, i32, i32) {
    %c0_i32 = arith.constant 0 : i32
    %c0_i32_0 = arith.constant 0 : i32
    return %arg0, %arg1, %c0_i32 : i32, i32, i32
  }
  func.func @transform_3(%arg0: i32, %arg1: i32) -> (i32, i32, i32) {
    %c0_i32 = arith.constant 0 : i32
    %c0_i32_0 = arith.constant 0 : i32
    %c0_i32_1 = arith.constant 0 : i32
    return %arg0, %c0_i32, %c0_i32_0 : i32, i32, i32
  }
}

module attributes {stable_mosaic.version = 11 : i64} {
  func.func @_fused_loss_kernel(%arg0: i32, %arg1: i32, %arg2: memref<1x32x32xf32, #tpu.memory_space<vmem>>, %arg3: memref<1x32x32xf32, #tpu.memory_space<vmem>>, %arg4: memref<1x32x32xf32, #tpu.memory_space<vmem>>, %arg5: memref<1x1x1xf32, #tpu.memory_space<vmem>>, %arg6: memref<1x1x1xf32, #tpu.memory_space<vmem>>, %arg7: memref<1x8x128xf32, #tpu.memory_space<vmem>>, %arg8: memref<8x32xf32, #tpu.memory_space<vmem>>, %arg9: memref<8x32xf32, #tpu.memory_space<vmem>>) attributes {dimension_semantics = [#tpu.dimension_semantics<parallel>, #tpu.dimension_semantics<arbitrary>], iteration_bounds = array<i64: 2, 1>, scalar_prefetch = 0 : i64, scratch_operands = 2 : i64, tpu.core_type = #tpu.core_type<tc>, window_params = [{transform_indices = @transform_0, window_bounds = array<i64: 1, 32, 32>}, {transform_indices = @transform_1, window_bounds = array<i64: 1, 32, 32>}, {transform_indices = @transform_2, window_bounds = array<i64: 1, 32, 32>}, {transform_indices = @transform_3, window_bounds = array<i64: 1, 1, 1>}, {transform_indices = @transform_4, window_bounds = array<i64: 1, 1, 1>}, {transform_indices = @transform_5, window_bounds = array<i64: 1, 8, 128>}]} {
    %c0 = arith.constant 0 : index
    %c0_0 = arith.constant 0 : index
    %c0_1 = arith.constant 0 : index
    %0 = vector.load %arg2[%c0, %c0_0, %c0_1] : memref<1x32x32xf32, #tpu.memory_space<vmem>>, vector<1x32x32xf32>
    %1 = vector.shape_cast %0 : vector<1x32x32xf32> to vector<32x32xf32>
    %c0_2 = arith.constant 0 : index
    %c0_3 = arith.constant 0 : index
    %c0_4 = arith.constant 0 : index
    %2 = vector.load %arg3[%c0_2, %c0_3, %c0_4] : memref<1x32x32xf32, #tpu.memory_space<vmem>>, vector<1x32x32xf32>
    %3 = vector.shape_cast %2 : vector<1x32x32xf32> to vector<32x32xf32>
    %c0_5 = arith.constant 0 : index
    %c0_6 = arith.constant 0 : index
    %c0_7 = arith.constant 0 : index
    %4 = vector.load %arg4[%c0_5, %c0_6, %c0_7] : memref<1x32x32xf32, #tpu.memory_space<vmem>>, vector<1x32x32xf32>
    %5 = vector.shape_cast %4 : vector<1x32x32xf32> to vector<32x32xf32>
    %c0_8 = arith.constant 0 : index
    %c0_9 = arith.constant 0 : index
    %c0_10 = arith.constant 0 : index
    %6 = vector.load %arg5[%c0_8, %c0_9, %c0_10] : memref<1x1x1xf32, #tpu.memory_space<vmem>>, vector<1x1x1xf32>
    %7 = vector.shape_cast %6 : vector<1x1x1xf32> to vector<1x1xf32>
    %c0_11 = arith.constant 0 : index
    %c0_12 = arith.constant 0 : index
    %c0_13 = arith.constant 0 : index
    %8 = vector.load %arg6[%c0_11, %c0_12, %c0_13] : memref<1x1x1xf32, #tpu.memory_space<vmem>>, vector<1x1x1xf32>
    %9 = vector.shape_cast %8 : vector<1x1x1xf32> to vector<1x1xf32>
    %10 = vector.broadcast %7 : vector<1x1xf32> to vector<32x32xf32>
    %11 = arith.mulf %10, %1 : vector<32x32xf32>
    %12 = vector.broadcast %9 : vector<1x1xf32> to vector<32x32xf32>
    %13 = arith.addf %11, %12 : vector<32x32xf32>
    %14 = arith.subf %13, %3 : vector<32x32xf32>
    %15 = arith.mulf %5, %14 : vector<32x32xf32>
    %16 = arith.mulf %15, %14 : vector<32x32xf32>
    %17 = vector.shape_cast %16 : vector<32x32xf32> to vector<1x32x32xf32>
    %cst = arith.constant dense<0.000000e+00> : vector<1xf32>
    %18 = vector.multi_reduction <add>, %17, %cst [1, 2] : vector<1x32x32xf32> to vector<1xf32>
    %19 = vector.shape_cast %18 : vector<1xf32> to vector<1x1x1xf32>
    %20 = vector.extract %19[0, 0, 0] : f32 from vector<1x1x1xf32>
    %21 = vector.broadcast %20 : f32 to vector<1x1xf32>
    %22 = vector.shape_cast %5 : vector<32x32xf32> to vector<1x32x32xf32>
    %cst_14 = arith.constant dense<0.000000e+00> : vector<1xf32>
    %23 = vector.multi_reduction <add>, %22, %cst_14 [1, 2] : vector<1x32x32xf32> to vector<1xf32>
    %24 = vector.shape_cast %23 : vector<1xf32> to vector<1x1x1xf32>
    %25 = vector.extract %24[0, 0, 0] : f32 from vector<1x1x1xf32>
    %26 = vector.broadcast %25 : f32 to vector<1x1xf32>
    %27 = tpu.iota {dimensions = array<i32: 0>} : vector<32x32xi32>
    %28 = tpu.iota {dimensions = array<i32: 1>} : vector<32x32xi32>
    %29 = vector.shape_cast %5 : vector<32x32xf32> to vector<1x32x32xf32>
    %cst_15 = arith.constant dense<0.000000e+00> : vector<1xf32>
    %30 = vector.multi_reduction <add>, %29, %cst_15 [1, 2] : vector<1x32x32xf32> to vector<1xf32>
    %31 = vector.shape_cast %30 : vector<1xf32> to vector<1x1x1xf32>
    %32 = vector.extract %31[0, 0, 0] : f32 from vector<1x1x1xf32>
    %33 = vector.broadcast %32 : f32 to vector<1x1xf32>
    %cst_16 = arith.constant 0.000000e+00 : f32
    %34 = vector.broadcast %cst_16 : f32 to vector<1x1xf32>
    %35 = vector.extract_strided_slice %15 {offsets = [0, 1], sizes = [32, 31], strides = [1, 1]} : vector<32x32xf32> to vector<32x31xf32>
    %36 = vector.extract_strided_slice %15 {offsets = [0, 0], sizes = [32, 31], strides = [1, 1]} : vector<32x32xf32> to vector<32x31xf32>
    %37 = arith.subf %35, %36 : vector<32x31xf32>
    %38 = math.absf %37 : vector<32x31xf32>
    %39 = vector.extract_strided_slice %5 {offsets = [0, 1], sizes = [32, 31], strides = [1, 1]} : vector<32x32xf32> to vector<32x31xf32>
    %40 = vector.extract_strided_slice %5 {offsets = [0, 0], sizes = [32, 31], strides = [1, 1]} : vector<32x32xf32> to vector<32x31xf32>
    %41 = arith.mulf %39, %40 : vector<32x31xf32>
    %42 = arith.mulf %38, %41 : vector<32x31xf32>
    %43 = vector.shape_cast %42 : vector<32x31xf32> to vector<1x32x31xf32>
    %cst_17 = arith.constant dense<0.000000e+00> : vector<1xf32>
    %44 = vector.multi_reduction <add>, %43, %cst_17 [1, 2] : vector<1x32x31xf32> to vector<1xf32>
    %45 = vector.shape_cast %44 : vector<1xf32> to vector<1x1x1xf32>
    %46 = vector.extract %45[0, 0, 0] : f32 from vector<1x1x1xf32>
    %47 = vector.broadcast %46 : f32 to vector<1x1xf32>
    %48 = arith.addf %34, %47 : vector<1x1xf32>
    %49 = vector.extract_strided_slice %15 {offsets = [1, 0], sizes = [31, 32], strides = [1, 1]} : vector<32x32xf32> to vector<31x32xf32>
    %50 = vector.extract_strided_slice %15 {offsets = [0, 0], sizes = [31, 32], strides = [1, 1]} : vector<32x32xf32> to vector<31x32xf32>
    %51 = arith.subf %49, %50 : vector<31x32xf32>
    %52 = math.absf %51 : vector<31x32xf32>
    %53 = vector.extract_strided_slice %5 {offsets = [1, 0], sizes = [31, 32], strides = [1, 1]} : vector<32x32xf32> to vector<31x32xf32>
    %54 = vector.extract_strided_slice %5 {offsets = [0, 0], sizes = [31, 32], strides = [1, 1]} : vector<32x32xf32> to vector<31x32xf32>
    %55 = arith.mulf %53, %54 : vector<31x32xf32>
    %56 = arith.mulf %52, %55 : vector<31x32xf32>
    %57 = vector.shape_cast %56 : vector<31x32xf32> to vector<1x31x32xf32>
    %cst_18 = arith.constant dense<0.000000e+00> : vector<1xf32>
    %58 = vector.multi_reduction <add>, %57, %cst_18 [1, 2] : vector<1x31x32xf32> to vector<1xf32>
    %59 = vector.shape_cast %58 : vector<1xf32> to vector<1x1x1xf32>
    %60 = vector.extract %59[0, 0, 0] : f32 from vector<1x1x1xf32>
    %61 = vector.broadcast %60 : f32 to vector<1x1xf32>
    %62 = arith.addf %48, %61 : vector<1x1xf32>
    %c2_i32 = arith.constant 2 : i32
    %c0_i32 = arith.constant 0 : i32
    %63 = arith.cmpi eq, %c2_i32, %c0_i32 : i32
    %c1_i32 = arith.constant 1 : i32
    %64 = arith.select %63, %c1_i32, %c2_i32 : i32
    %65 = vector.broadcast %64 : i32 to vector<32x32xi32>
    %66 = arith.remsi %27, %65 : vector<32x32xi32>
    %c0_i32_19 = arith.constant 0 : i32
    %67 = vector.broadcast %c0_i32_19 : i32 to vector<32x32xi32>
    %68 = arith.cmpi ne, %66, %67 : vector<32x32xi32>
    %c0_i32_20 = arith.constant 0 : i32
    %69 = vector.broadcast %c0_i32_20 : i32 to vector<32x32xi32>
    %70 = arith.cmpi slt, %66, %69 : vector<32x32xi32>
    %c0_i32_21 = arith.constant 0 : i32
    %71 = arith.cmpi slt, %64, %c0_i32_21 : i32
    %72 = vector.broadcast %71 : i1 to vector<32x32xi1>
    %73 = vector.broadcast %72 : vector<32x32xi1> to vector<32x32xi1>
    %74 = arith.xori %70, %73 : vector<32x32xi1>
    %75 = arith.andi %74, %68 : vector<32x32xi1>
    %76 = vector.broadcast %64 : i32 to vector<32x32xi32>
    %77 = arith.addi %66, %76 : vector<32x32xi32>
    %78 = arith.select %75, %77, %66 : vector<32x32xi1>, vector<32x32xi32>
    %c0_i32_22 = arith.constant 0 : i32
    %79 = vector.broadcast %c0_i32_22 : i32 to vector<32x32xi32>
    %80 = arith.cmpi eq, %78, %79 : vector<32x32xi32>
    %c2_i32_23 = arith.constant 2 : i32
    %c0_i32_24 = arith.constant 0 : i32
    %81 = arith.cmpi eq, %c2_i32_23, %c0_i32_24 : i32
    %c1_i32_25 = arith.constant 1 : i32
    %82 = arith.select %81, %c1_i32_25, %c2_i32_23 : i32
    %83 = vector.broadcast %82 : i32 to vector<32x32xi32>
    %84 = arith.remsi %28, %83 : vector<32x32xi32>
    %c0_i32_26 = arith.constant 0 : i32
    %85 = vector.broadcast %c0_i32_26 : i32 to vector<32x32xi32>
    %86 = arith.cmpi ne, %84, %85 : vector<32x32xi32>
    %c0_i32_27 = arith.constant 0 : i32
    %87 = vector.broadcast %c0_i32_27 : i32 to vector<32x32xi32>
    %88 = arith.cmpi slt, %84, %87 : vector<32x32xi32>
    %c0_i32_28 = arith.constant 0 : i32
    %89 = arith.cmpi slt, %82, %c0_i32_28 : i32
    %90 = vector.broadcast %89 : i1 to vector<32x32xi1>
    %91 = vector.broadcast %90 : vector<32x32xi1> to vector<32x32xi1>
    %92 = arith.xori %88, %91 : vector<32x32xi1>
    %93 = arith.andi %92, %86 : vector<32x32xi1>
    %94 = vector.broadcast %82 : i32 to vector<32x32xi32>
    %95 = arith.addi %84, %94 : vector<32x32xi32>
    %96 = arith.select %93, %95, %84 : vector<32x32xi1>, vector<32x32xi32>
    %c0_i32_29 = arith.constant 0 : i32
    %97 = vector.broadcast %c0_i32_29 : i32 to vector<32x32xi32>
    %98 = arith.cmpi eq, %96, %97 : vector<32x32xi32>
    %99 = arith.andi %80, %98 : vector<32x32xi1>
    %cst_30 = arith.constant 0.000000e+00 : f32
    %100 = vector.broadcast %cst_30 : f32 to vector<32x32xf32>
    %101 = arith.select %99, %5, %100 : vector<32x32xi1>, vector<32x32xf32>
    %102 = vector.shape_cast %101 : vector<32x32xf32> to vector<1x32x32xf32>
    %cst_31 = arith.constant dense<0.000000e+00> : vector<1xf32>
    %103 = vector.multi_reduction <add>, %102, %cst_31 [1, 2] : vector<1x32x32xf32> to vector<1xf32>
    %104 = vector.shape_cast %103 : vector<1xf32> to vector<1x1x1xf32>
    %105 = vector.extract %104[0, 0, 0] : f32 from vector<1x1x1xf32>
    %106 = vector.broadcast %105 : f32 to vector<1x1xf32>
    %cst_32 = arith.constant 0.000000e+00 : f32
    %107 = vector.broadcast %cst_32 : f32 to vector<1x1xf32>
    %108 = vector.extract_strided_slice %15 {offsets = [0, 2], sizes = [32, 30], strides = [1, 1]} : vector<32x32xf32> to vector<32x30xf32>
    %109 = vector.extract_strided_slice %15 {offsets = [0, 0], sizes = [32, 30], strides = [1, 1]} : vector<32x32xf32> to vector<32x30xf32>
    %110 = arith.subf %108, %109 : vector<32x30xf32>
    %111 = math.absf %110 : vector<32x30xf32>
    %112 = vector.extract_strided_slice %5 {offsets = [0, 2], sizes = [32, 30], strides = [1, 1]} : vector<32x32xf32> to vector<32x30xf32>
    %113 = vector.extract_strided_slice %5 {offsets = [0, 0], sizes = [32, 30], strides = [1, 1]} : vector<32x32xf32> to vector<32x30xf32>
    %114 = arith.mulf %112, %113 : vector<32x30xf32>
    %115 = arith.mulf %111, %114 : vector<32x30xf32>
    %116 = vector.extract_strided_slice %99 {offsets = [0, 0], sizes = [32, 30], strides = [1, 1]} : vector<32x32xi1> to vector<32x30xi1>
    %cst_33 = arith.constant 0.000000e+00 : f32
    %117 = vector.broadcast %cst_33 : f32 to vector<32x30xf32>
    %118 = arith.select %116, %115, %117 : vector<32x30xi1>, vector<32x30xf32>
    %119 = vector.shape_cast %118 : vector<32x30xf32> to vector<1x32x30xf32>
    %cst_34 = arith.constant dense<0.000000e+00> : vector<1xf32>
    %120 = vector.multi_reduction <add>, %119, %cst_34 [1, 2] : vector<1x32x30xf32> to vector<1xf32>
    %121 = vector.shape_cast %120 : vector<1xf32> to vector<1x1x1xf32>
    %122 = vector.extract %121[0, 0, 0] : f32 from vector<1x1x1xf32>
    %123 = vector.broadcast %122 : f32 to vector<1x1xf32>
    %124 = arith.addf %107, %123 : vector<1x1xf32>
    %125 = vector.extract_strided_slice %15 {offsets = [2, 0], sizes = [30, 32], strides = [1, 1]} : vector<32x32xf32> to vector<30x32xf32>
    %126 = vector.extract_strided_slice %15 {offsets = [0, 0], sizes = [30, 32], strides = [1, 1]} : vector<32x32xf32> to vector<30x32xf32>
    %127 = arith.subf %125, %126 : vector<30x32xf32>
    %128 = math.absf %127 : vector<30x32xf32>
    %129 = vector.extract_strided_slice %5 {offsets = [2, 0], sizes = [30, 32], strides = [1, 1]} : vector<32x32xf32> to vector<30x32xf32>
    %130 = vector.extract_strided_slice %5 {offsets = [0, 0], sizes = [30, 32], strides = [1, 1]} : vector<32x32xf32> to vector<30x32xf32>
    %131 = arith.mulf %129, %130 : vector<30x32xf32>
    %132 = arith.mulf %128, %131 : vector<30x32xf32>
    %133 = vector.extract_strided_slice %99 {offsets = [0, 0], sizes = [30, 32], strides = [1, 1]} : vector<32x32xi1> to vector<30x32xi1>
    %cst_35 = arith.constant 0.000000e+00 : f32
    %134 = vector.broadcast %cst_35 : f32 to vector<30x32xf32>
    %135 = arith.select %133, %132, %134 : vector<30x32xi1>, vector<30x32xf32>
    %136 = vector.shape_cast %135 : vector<30x32xf32> to vector<1x30x32xf32>
    %cst_36 = arith.constant dense<0.000000e+00> : vector<1xf32>
    %137 = vector.multi_reduction <add>, %136, %cst_36 [1, 2] : vector<1x30x32xf32> to vector<1xf32>
    %138 = vector.shape_cast %137 : vector<1xf32> to vector<1x1x1xf32>
    %139 = vector.extract %138[0, 0, 0] : f32 from vector<1x1x1xf32>
    %140 = vector.broadcast %139 : f32 to vector<1x1xf32>
    %141 = arith.addf %124, %140 : vector<1x1xf32>
    %c4_i32 = arith.constant 4 : i32
    %c0_i32_37 = arith.constant 0 : i32
    %142 = arith.cmpi eq, %c4_i32, %c0_i32_37 : i32
    %c1_i32_38 = arith.constant 1 : i32
    %143 = arith.select %142, %c1_i32_38, %c4_i32 : i32
    %144 = vector.broadcast %143 : i32 to vector<32x32xi32>
    %145 = arith.remsi %27, %144 : vector<32x32xi32>
    %c0_i32_39 = arith.constant 0 : i32
    %146 = vector.broadcast %c0_i32_39 : i32 to vector<32x32xi32>
    %147 = arith.cmpi ne, %145, %146 : vector<32x32xi32>
    %c0_i32_40 = arith.constant 0 : i32
    %148 = vector.broadcast %c0_i32_40 : i32 to vector<32x32xi32>
    %149 = arith.cmpi slt, %145, %148 : vector<32x32xi32>
    %c0_i32_41 = arith.constant 0 : i32
    %150 = arith.cmpi slt, %143, %c0_i32_41 : i32
    %151 = vector.broadcast %150 : i1 to vector<32x32xi1>
    %152 = vector.broadcast %151 : vector<32x32xi1> to vector<32x32xi1>
    %153 = arith.xori %149, %152 : vector<32x32xi1>
    %154 = arith.andi %153, %147 : vector<32x32xi1>
    %155 = vector.broadcast %143 : i32 to vector<32x32xi32>
    %156 = arith.addi %145, %155 : vector<32x32xi32>
    %157 = arith.select %154, %156, %145 : vector<32x32xi1>, vector<32x32xi32>
    %c0_i32_42 = arith.constant 0 : i32
    %158 = vector.broadcast %c0_i32_42 : i32 to vector<32x32xi32>
    %159 = arith.cmpi eq, %157, %158 : vector<32x32xi32>
    %c4_i32_43 = arith.constant 4 : i32
    %c0_i32_44 = arith.constant 0 : i32
    %160 = arith.cmpi eq, %c4_i32_43, %c0_i32_44 : i32
    %c1_i32_45 = arith.constant 1 : i32
    %161 = arith.select %160, %c1_i32_45, %c4_i32_43 : i32
    %162 = vector.broadcast %161 : i32 to vector<32x32xi32>
    %163 = arith.remsi %28, %162 : vector<32x32xi32>
    %c0_i32_46 = arith.constant 0 : i32
    %164 = vector.broadcast %c0_i32_46 : i32 to vector<32x32xi32>
    %165 = arith.cmpi ne, %163, %164 : vector<32x32xi32>
    %c0_i32_47 = arith.constant 0 : i32
    %166 = vector.broadcast %c0_i32_47 : i32 to vector<32x32xi32>
    %167 = arith.cmpi slt, %163, %166 : vector<32x32xi32>
    %c0_i32_48 = arith.constant 0 : i32
    %168 = arith.cmpi slt, %161, %c0_i32_48 : i32
    %169 = vector.broadcast %168 : i1 to vector<32x32xi1>
    %170 = vector.broadcast %169 : vector<32x32xi1> to vector<32x32xi1>
    %171 = arith.xori %167, %170 : vector<32x32xi1>
    %172 = arith.andi %171, %165 : vector<32x32xi1>
    %173 = vector.broadcast %161 : i32 to vector<32x32xi32>
    %174 = arith.addi %163, %173 : vector<32x32xi32>
    %175 = arith.select %172, %174, %163 : vector<32x32xi1>, vector<32x32xi32>
    %c0_i32_49 = arith.constant 0 : i32
    %176 = vector.broadcast %c0_i32_49 : i32 to vector<32x32xi32>
    %177 = arith.cmpi eq, %175, %176 : vector<32x32xi32>
    %178 = arith.andi %159, %177 : vector<32x32xi1>
    %cst_50 = arith.constant 0.000000e+00 : f32
    %179 = vector.broadcast %cst_50 : f32 to vector<32x32xf32>
    %180 = arith.select %178, %5, %179 : vector<32x32xi1>, vector<32x32xf32>
    %181 = vector.shape_cast %180 : vector<32x32xf32> to vector<1x32x32xf32>
    %cst_51 = arith.constant dense<0.000000e+00> : vector<1xf32>
    %182 = vector.multi_reduction <add>, %181, %cst_51 [1, 2] : vector<1x32x32xf32> to vector<1xf32>
    %183 = vector.shape_cast %182 : vector<1xf32> to vector<1x1x1xf32>
    %184 = vector.extract %183[0, 0, 0] : f32 from vector<1x1x1xf32>
    %185 = vector.broadcast %184 : f32 to vector<1x1xf32>
    %cst_52 = arith.constant 0.000000e+00 : f32
    %186 = vector.broadcast %cst_52 : f32 to vector<1x1xf32>
    %187 = vector.extract_strided_slice %15 {offsets = [0, 4], sizes = [32, 28], strides = [1, 1]} : vector<32x32xf32> to vector<32x28xf32>
    %188 = vector.extract_strided_slice %15 {offsets = [0, 0], sizes = [32, 28], strides = [1, 1]} : vector<32x32xf32> to vector<32x28xf32>
    %189 = arith.subf %187, %188 : vector<32x28xf32>
    %190 = math.absf %189 : vector<32x28xf32>
    %191 = vector.extract_strided_slice %5 {offsets = [0, 4], sizes = [32, 28], strides = [1, 1]} : vector<32x32xf32> to vector<32x28xf32>
    %192 = vector.extract_strided_slice %5 {offsets = [0, 0], sizes = [32, 28], strides = [1, 1]} : vector<32x32xf32> to vector<32x28xf32>
    %193 = arith.mulf %191, %192 : vector<32x28xf32>
    %194 = arith.mulf %190, %193 : vector<32x28xf32>
    %195 = vector.extract_strided_slice %178 {offsets = [0, 0], sizes = [32, 28], strides = [1, 1]} : vector<32x32xi1> to vector<32x28xi1>
    %cst_53 = arith.constant 0.000000e+00 : f32
    %196 = vector.broadcast %cst_53 : f32 to vector<32x28xf32>
    %197 = arith.select %195, %194, %196 : vector<32x28xi1>, vector<32x28xf32>
    %198 = vector.shape_cast %197 : vector<32x28xf32> to vector<1x32x28xf32>
    %cst_54 = arith.constant dense<0.000000e+00> : vector<1xf32>
    %199 = vector.multi_reduction <add>, %198, %cst_54 [1, 2] : vector<1x32x28xf32> to vector<1xf32>
    %200 = vector.shape_cast %199 : vector<1xf32> to vector<1x1x1xf32>
    %201 = vector.extract %200[0, 0, 0] : f32 from vector<1x1x1xf32>
    %202 = vector.broadcast %201 : f32 to vector<1x1xf32>
    %203 = arith.addf %186, %202 : vector<1x1xf32>
    %204 = vector.extract_strided_slice %15 {offsets = [4, 0], sizes = [28, 32], strides = [1, 1]} : vector<32x32xf32> to vector<28x32xf32>
    %205 = vector.extract_strided_slice %15 {offsets = [0, 0], sizes = [28, 32], strides = [1, 1]} : vector<32x32xf32> to vector<28x32xf32>
    %206 = arith.subf %204, %205 : vector<28x32xf32>
    %207 = math.absf %206 : vector<28x32xf32>
    %208 = vector.extract_strided_slice %5 {offsets = [4, 0], sizes = [28, 32], strides = [1, 1]} : vector<32x32xf32> to vector<28x32xf32>
    %209 = vector.extract_strided_slice %5 {offsets = [0, 0], sizes = [28, 32], strides = [1, 1]} : vector<32x32xf32> to vector<28x32xf32>
    %210 = arith.mulf %208, %209 : vector<28x32xf32>
    %211 = arith.mulf %207, %210 : vector<28x32xf32>
    %212 = vector.extract_strided_slice %178 {offsets = [0, 0], sizes = [28, 32], strides = [1, 1]} : vector<32x32xi1> to vector<28x32xi1>
    %cst_55 = arith.constant 0.000000e+00 : f32
    %213 = vector.broadcast %cst_55 : f32 to vector<28x32xf32>
    %214 = arith.select %212, %211, %213 : vector<28x32xi1>, vector<28x32xf32>
    %215 = vector.shape_cast %214 : vector<28x32xf32> to vector<1x28x32xf32>
    %cst_56 = arith.constant dense<0.000000e+00> : vector<1xf32>
    %216 = vector.multi_reduction <add>, %215, %cst_56 [1, 2] : vector<1x28x32xf32> to vector<1xf32>
    %217 = vector.shape_cast %216 : vector<1xf32> to vector<1x1x1xf32>
    %218 = vector.extract %217[0, 0, 0] : f32 from vector<1x1x1xf32>
    %219 = vector.broadcast %218 : f32 to vector<1x1xf32>
    %220 = arith.addf %203, %219 : vector<1x1xf32>
    %c8_i32 = arith.constant 8 : i32
    %c0_i32_57 = arith.constant 0 : i32
    %221 = arith.cmpi eq, %c8_i32, %c0_i32_57 : i32
    %c1_i32_58 = arith.constant 1 : i32
    %222 = arith.select %221, %c1_i32_58, %c8_i32 : i32
    %223 = vector.broadcast %222 : i32 to vector<32x32xi32>
    %224 = arith.remsi %27, %223 : vector<32x32xi32>
    %c0_i32_59 = arith.constant 0 : i32
    %225 = vector.broadcast %c0_i32_59 : i32 to vector<32x32xi32>
    %226 = arith.cmpi ne, %224, %225 : vector<32x32xi32>
    %c0_i32_60 = arith.constant 0 : i32
    %227 = vector.broadcast %c0_i32_60 : i32 to vector<32x32xi32>
    %228 = arith.cmpi slt, %224, %227 : vector<32x32xi32>
    %c0_i32_61 = arith.constant 0 : i32
    %229 = arith.cmpi slt, %222, %c0_i32_61 : i32
    %230 = vector.broadcast %229 : i1 to vector<32x32xi1>
    %231 = vector.broadcast %230 : vector<32x32xi1> to vector<32x32xi1>
    %232 = arith.xori %228, %231 : vector<32x32xi1>
    %233 = arith.andi %232, %226 : vector<32x32xi1>
    %234 = vector.broadcast %222 : i32 to vector<32x32xi32>
    %235 = arith.addi %224, %234 : vector<32x32xi32>
    %236 = arith.select %233, %235, %224 : vector<32x32xi1>, vector<32x32xi32>
    %c0_i32_62 = arith.constant 0 : i32
    %237 = vector.broadcast %c0_i32_62 : i32 to vector<32x32xi32>
    %238 = arith.cmpi eq, %236, %237 : vector<32x32xi32>
    %c8_i32_63 = arith.constant 8 : i32
    %c0_i32_64 = arith.constant 0 : i32
    %239 = arith.cmpi eq, %c8_i32_63, %c0_i32_64 : i32
    %c1_i32_65 = arith.constant 1 : i32
    %240 = arith.select %239, %c1_i32_65, %c8_i32_63 : i32
    %241 = vector.broadcast %240 : i32 to vector<32x32xi32>
    %242 = arith.remsi %28, %241 : vector<32x32xi32>
    %c0_i32_66 = arith.constant 0 : i32
    %243 = vector.broadcast %c0_i32_66 : i32 to vector<32x32xi32>
    %244 = arith.cmpi ne, %242, %243 : vector<32x32xi32>
    %c0_i32_67 = arith.constant 0 : i32
    %245 = vector.broadcast %c0_i32_67 : i32 to vector<32x32xi32>
    %246 = arith.cmpi slt, %242, %245 : vector<32x32xi32>
    %c0_i32_68 = arith.constant 0 : i32
    %247 = arith.cmpi slt, %240, %c0_i32_68 : i32
    %248 = vector.broadcast %247 : i1 to vector<32x32xi1>
    %249 = vector.broadcast %248 : vector<32x32xi1> to vector<32x32xi1>
    %250 = arith.xori %246, %249 : vector<32x32xi1>
    %251 = arith.andi %250, %244 : vector<32x32xi1>
    %252 = vector.broadcast %240 : i32 to vector<32x32xi32>
    %253 = arith.addi %242, %252 : vector<32x32xi32>
    %254 = arith.select %251, %253, %242 : vector<32x32xi1>, vector<32x32xi32>
    %c0_i32_69 = arith.constant 0 : i32
    %255 = vector.broadcast %c0_i32_69 : i32 to vector<32x32xi32>
    %256 = arith.cmpi eq, %254, %255 : vector<32x32xi32>
    %257 = arith.andi %238, %256 : vector<32x32xi1>
    %cst_70 = arith.constant 0.000000e+00 : f32
    %258 = vector.broadcast %cst_70 : f32 to vector<32x32xf32>
    %259 = arith.select %257, %5, %258 : vector<32x32xi1>, vector<32x32xf32>
    %260 = vector.shape_cast %259 : vector<32x32xf32> to vector<1x32x32xf32>
    %cst_71 = arith.constant dense<0.000000e+00> : vector<1xf32>
    %261 = vector.multi_reduction <add>, %260, %cst_71 [1, 2] : vector<1x32x32xf32> to vector<1xf32>
    %262 = vector.shape_cast %261 : vector<1xf32> to vector<1x1x1xf32>
    %263 = vector.extract %262[0, 0, 0] : f32 from vector<1x1x1xf32>
    %264 = vector.broadcast %263 : f32 to vector<1x1xf32>
    %cst_72 = arith.constant 0.000000e+00 : f32
    %265 = vector.broadcast %cst_72 : f32 to vector<1x1xf32>
    %266 = vector.extract_strided_slice %15 {offsets = [0, 8], sizes = [32, 24], strides = [1, 1]} : vector<32x32xf32> to vector<32x24xf32>
    %267 = vector.extract_strided_slice %15 {offsets = [0, 0], sizes = [32, 24], strides = [1, 1]} : vector<32x32xf32> to vector<32x24xf32>
    %268 = arith.subf %266, %267 : vector<32x24xf32>
    %269 = math.absf %268 : vector<32x24xf32>
    %270 = vector.extract_strided_slice %5 {offsets = [0, 8], sizes = [32, 24], strides = [1, 1]} : vector<32x32xf32> to vector<32x24xf32>
    %271 = vector.extract_strided_slice %5 {offsets = [0, 0], sizes = [32, 24], strides = [1, 1]} : vector<32x32xf32> to vector<32x24xf32>
    %272 = arith.mulf %270, %271 : vector<32x24xf32>
    %273 = arith.mulf %269, %272 : vector<32x24xf32>
    %274 = vector.extract_strided_slice %257 {offsets = [0, 0], sizes = [32, 24], strides = [1, 1]} : vector<32x32xi1> to vector<32x24xi1>
    %cst_73 = arith.constant 0.000000e+00 : f32
    %275 = vector.broadcast %cst_73 : f32 to vector<32x24xf32>
    %276 = arith.select %274, %273, %275 : vector<32x24xi1>, vector<32x24xf32>
    %277 = vector.shape_cast %276 : vector<32x24xf32> to vector<1x32x24xf32>
    %cst_74 = arith.constant dense<0.000000e+00> : vector<1xf32>
    %278 = vector.multi_reduction <add>, %277, %cst_74 [1, 2] : vector<1x32x24xf32> to vector<1xf32>
    %279 = vector.shape_cast %278 : vector<1xf32> to vector<1x1x1xf32>
    %280 = vector.extract %279[0, 0, 0] : f32 from vector<1x1x1xf32>
    %281 = vector.broadcast %280 : f32 to vector<1x1xf32>
    %282 = arith.addf %265, %281 : vector<1x1xf32>
    %283 = vector.extract_strided_slice %15 {offsets = [8, 0], sizes = [24, 32], strides = [1, 1]} : vector<32x32xf32> to vector<24x32xf32>
    %284 = vector.extract_strided_slice %15 {offsets = [0, 0], sizes = [24, 32], strides = [1, 1]} : vector<32x32xf32> to vector<24x32xf32>
    %285 = arith.subf %283, %284 : vector<24x32xf32>
    %286 = math.absf %285 : vector<24x32xf32>
    %287 = vector.extract_strided_slice %5 {offsets = [8, 0], sizes = [24, 32], strides = [1, 1]} : vector<32x32xf32> to vector<24x32xf32>
    %288 = vector.extract_strided_slice %5 {offsets = [0, 0], sizes = [24, 32], strides = [1, 1]} : vector<32x32xf32> to vector<24x32xf32>
    %289 = arith.mulf %287, %288 : vector<24x32xf32>
    %290 = arith.mulf %286, %289 : vector<24x32xf32>
    %291 = vector.extract_strided_slice %257 {offsets = [0, 0], sizes = [24, 32], strides = [1, 1]} : vector<32x32xi1> to vector<24x32xi1>
    %cst_75 = arith.constant 0.000000e+00 : f32
    %292 = vector.broadcast %cst_75 : f32 to vector<24x32xf32>
    %293 = arith.select %291, %290, %292 : vector<24x32xi1>, vector<24x32xf32>
    %294 = vector.shape_cast %293 : vector<24x32xf32> to vector<1x24x32xf32>
    %cst_76 = arith.constant dense<0.000000e+00> : vector<1xf32>
    %295 = vector.multi_reduction <add>, %294, %cst_76 [1, 2] : vector<1x24x32xf32> to vector<1xf32>
    %296 = vector.shape_cast %295 : vector<1xf32> to vector<1x1x1xf32>
    %297 = vector.extract %296[0, 0, 0] : f32 from vector<1x1x1xf32>
    %298 = vector.broadcast %297 : f32 to vector<1x1xf32>
    %299 = arith.addf %282, %298 : vector<1x1xf32>
    %300 = tpu.concatenate %21, %26, %62, %141, %220, %299, %33, %106, %185, %264 in 1 : vector<1x1xf32>, vector<1x1xf32>, vector<1x1xf32>, vector<1x1xf32>, vector<1x1xf32>, vector<1x1xf32>, vector<1x1xf32>, vector<1x1xf32>, vector<1x1xf32>, vector<1x1xf32> -> vector<1x10xf32>
    %c0_i32_77 = arith.constant 0 : i32
    %301 = arith.cmpi eq, %arg1, %c0_i32_77 : i32
    %302 = arith.extui %301 : i1 to i32
    %c0_i32_78 = arith.constant 0 : i32
    %303 = arith.cmpi ne, %302, %c0_i32_78 : i32
    scf.if %303 {
      %cst_85 = arith.constant 0.000000e+00 : f32
      %310 = vector.broadcast %cst_85 : f32 to vector<1x8x128xf32>
      %c0_86 = arith.constant 0 : index
      %c0_87 = arith.constant 0 : index
      %c0_88 = arith.constant 0 : index
      %311 = vector.load %arg7[%c0_86, %c0_87, %c0_88] : memref<1x8x128xf32, #tpu.memory_space<vmem>>, vector<1x8x128xf32>
      tpu.vector_store %arg7[%c0_86, %c0_87, %c0_88], %310 {strides = array<i32>} : memref<1x8x128xf32, #tpu.memory_space<vmem>>, vector<1x8x128xf32>,
    } else {
    }
    %c0_79 = arith.constant 0 : index
    %c0_80 = arith.constant 0 : index
    %c0_81 = arith.constant 0 : index
    %304 = vector.load %arg7[%c0_79, %c0_80, %c0_81] : memref<1x8x128xf32, #tpu.memory_space<vmem>>, vector<1x1x10xf32>
    %305 = vector.shape_cast %304 : vector<1x1x10xf32> to vector<1x10xf32>
    %306 = arith.addf %305, %300 : vector<1x10xf32>
    %c0_82 = arith.constant 0 : index
    %c0_83 = arith.constant 0 : index
    %c0_84 = arith.constant 0 : index
    %307 = vector.load %arg7[%c0_82, %c0_83, %c0_84] : memref<1x8x128xf32, #tpu.memory_space<vmem>>, vector<1x1x10xf32>
    %308 = vector.shape_cast %307 : vector<1x1x10xf32> to vector<1x10xf32>
    %309 = vector.shape_cast %306 : vector<1x10xf32> to vector<1x1x10xf32>
    tpu.vector_store %arg7[%c0_82, %c0_83, %c0_84], %309 {strides = array<i32>} : memref<1x8x128xf32, #tpu.memory_space<vmem>>, vector<1x1x10xf32>,
    return
  }
  func.func @transform_0(%arg0: i32, %arg1: i32) -> (i32, i32, i32) {
    %c0_i32 = arith.constant 0 : i32
    %c0_i32_0 = arith.constant 0 : i32
    return %arg0, %arg1, %c0_i32 : i32, i32, i32
  }
  func.func @transform_1(%arg0: i32, %arg1: i32) -> (i32, i32, i32) {
    %c0_i32 = arith.constant 0 : i32
    %c0_i32_0 = arith.constant 0 : i32
    return %arg0, %arg1, %c0_i32 : i32, i32, i32
  }
  func.func @transform_2(%arg0: i32, %arg1: i32) -> (i32, i32, i32) {
    %c0_i32 = arith.constant 0 : i32
    %c0_i32_0 = arith.constant 0 : i32
    return %arg0, %arg1, %c0_i32 : i32, i32, i32
  }
  func.func @transform_3(%arg0: i32, %arg1: i32) -> (i32, i32, i32) {
    %c0_i32 = arith.constant 0 : i32
    %c0_i32_0 = arith.constant 0 : i32
    %c0_i32_1 = arith.constant 0 : i32
    return %arg0, %c0_i32, %c0_i32_0 : i32, i32, i32
  }
  func.func @transform_4(%arg0: i32, %arg1: i32) -> (i32, i32, i32) {
    %c0_i32 = arith.constant 0 : i32
    %c0_i32_0 = arith.constant 0 : i32
    %c0_i32_1 = arith.constant 0 : i32
    return %arg0, %c0_i32, %c0_i32_0 : i32, i32, i32
  }
  func.func @transform_5(%arg0: i32, %arg1: i32) -> (i32, i32, i32) {
    %c0_i32 = arith.constant 0 : i32
    %c0_i32_0 = arith.constant 0 : i32
    %c0_i32_1 = arith.constant 0 : i32
    return %arg0, %c0_i32, %c0_i32_0 : i32, i32, i32
  }
}

</mosaic_0001>

<llo_original>
// kernel: scale_and_shift_invariant_loss.2
$region0: #{scale_and_shift_invariant_loss.2}
  #allocation0 [shape = 'u32[]', space=smem, size = 0x4, offset = 0x4, fixed_abs, tag = 'smem constant byte address 0x4 - core index']
  #allocation1 [shape = 'u32[144,128]{1,0:T(1,128)}', space=vmem, size = 0x12000, scoped, tag = 'internal scratch']
  %s0 = inlined_call_operand.hbm [shape: f32[2,32,32], index: 0, kind: input, shape index: {}]
  %s1 = inlined_call_operand.hbm [shape: f32[2,32,32], index: 1, kind: input, shape index: {}]
  %s2 = inlined_call_operand.hbm [shape: f32[2,32,32], index: 2, kind: input, shape index: {}]
  %s3 = inlined_call_operand.vmem [shape: f32[2,8,128], index: 3, kind: output, shape index: {}]
  %s4 = sld [smem:[#allocation0]]
  $region61: #{scale_and_shift_invariant_loss.2} parent=0
    _
  %s6 = ssub.s32 1, %s4
  %s7 = scalar_select 0, %s6, %s4
  $region1: #{scale_and_shift_invariant_loss.2} parent=0
    #allocation2 [shape = 'u8[32768]{0}', space=vmem, size = 0x8000, scoped, tag = 'input window, operand 0']
    #allocation3 [shape = 's32[2]{0}', space=sflag, size = 0x8, scoped, tag = 'scoped memory for scale_and_shift_invariant_loss.2']
    #allocation4 [shape = 'u8[32768]{0}', space=vmem, size = 0x8000, scoped, tag = 'input window, operand 1']
    #allocation5 [shape = 's32[2]{0}', space=sflag, size = 0x8, scoped, tag = 'scoped memory for scale_and_shift_invariant_loss.2']
    #allocation6 [shape = 'u8[32768]{0}', space=vmem, size = 0x8000, scoped, tag = 'input window, operand 2']
    %8 = vsyncpa [#allocation3], 0
    %s9 = scalar_lea.sflag [#allocation3], 1
    %10 = vsyncpa %s9, 0
    %11 = vsyncpa [#allocation5], 0
    %s12 = scalar_lea.sflag [#allocation5], 1
    %13 = vsyncpa %s12, 0
    loop: start=0, step=1, limit=4
    $region2: #{scale_and_shift_invariant_loss.2} parent=1 // loop_pre_header
      _
    $region3: #{scale_and_shift_invariant_loss.2} parent=1 // loop_header
      %s15 = sphi 0, %s19
      %p16 = scmp.ge.s32.totalorder %s15, 4
      %s22 = sphi 0, %s34
      %s23 = sphi 0, %s30
      %s24 = sphi 0, %s22
      %s25 = sphi 0, %s23
      %s26 = sphi 0, %s24
      %s27 = sphi 0, %s25
      %s39 = sphi 0, %s41
      %s42 = sphi 0, %s39
      %s43 = sphi 0, %s42
      %s59 = sphi 0, %s43
      %s67 = sphi 0, %s69
      %s70 = sphi 0, %s67
      %s71 = sphi 0, %s70
      %s87 = sphi 0, %s71
      %s95 = sphi 0, %s97
      %s98 = sphi 0, %s95
      %s99 = sphi 0, %s98
      %s115 = sphi 0, %s99
      %s121 = sphi 0, %s123
      %s124 = sphi 0, %s121
      %s125 = sphi 0, %s124
      %s141 = sphi 0, %s125
    $region4: #{scale_and_shift_invariant_loss.2} parent=1 // loop_header_branch
      %18 = sbr.rel (%p16) target = $region8
    $region5: #{scale_and_shift_invariant_loss.2} parent=1 // loop_body
      %s20 = ssub.s32 %s15, 1
      %s21 = ssub.s32 %s15, 2
      %s28 = sadd.s32 1, %s23
      %p29 = scmp.ge.s32.totalorder %s28, 1
      %s30 = scalar_select %p29, 0, %s28
      %s31 = sadd.s32 1, %s22
      %s32 = scalar_select %p29, %s31, %s22
      %p33 = scmp.ge.s32.totalorder %s32, 2
      %s34 = scalar_select %p33, 0, %s32
      %s35 = ssub.s32 %s22, %s34
      %s36 = ssub.s32 %s23, %s30
      %s37 = sor.u32 %s35, %s36
      %p38 = scmp.eq.s32.totalorder %s37, 0
      %s40 = sadd.s32 %s39, 1
      %s41 = scalar_select %p38, %s39, %s40
      %p44 = pneg %p38
      %p45 = scmp.eq.s32.totalorder %s15, 1
      %p46 = por %p44, %p45
      %p47 = scmp.ne.s32.totalorder %s39, %s42
      %p48 = scmp.eq.s32.totalorder %s15, 0
      %p49 = por %p47, %p48
      %p50 = scmp.ne.s32.totalorder %s39, %s42
      %p51 = scmp.eq.s32.totalorder %s20, 1
      %p52 = por %p50, %p51
      %p53 = scmp.ne.s32.totalorder %s42, %s43
      %p54 = scmp.eq.s32.totalorder %s20, 0
      %p55 = por %p53, %p54
      %p56 = scmp.ne.s32.totalorder %s42, %s43
      %p57 = scmp.eq.s32.totalorder %s21, 1
      %p58 = por %p56, %p57
      %p60 = scmp.ne.s32.totalorder %s43, %s59
      %p61 = scmp.eq.s32.totalorder %s21, 0
      %p62 = por %p60, %p61
      %s63 = ssub.s32 %s22, %s34
      %s64 = ssub.s32 %s23, %s30
      %s65 = sor.u32 %s63, %s64
      %p66 = scmp.eq.s32.totalorder %s65, 0
      %s68 = sadd.s32 %s67, 1
      %s69 = scalar_select %p66, %s67, %s68
      %p72 = pneg %p66
      %p73 = scmp.eq.s32.totalorder %s15, 1
      %p74 = por %p72, %p73
      %p75 = scmp.ne.s32.totalorder %s67, %s70
      %p76 = scmp.eq.s32.totalorder %s15, 0
      %p77 = por %p75, %p76
      %p78 = scmp.ne.s32.totalorder %s67, %s70
      %p79 = scmp.eq.s32.totalorder %s20, 1
      %p80 = por %p78, %p79
      %p81 = scmp.ne.s32.totalorder %s70, %s71
      %p82 = scmp.eq.s32.totalorder %s20, 0
      %p83 = por %p81, %p82
      %p84 = scmp.ne.s32.totalorder %s70, %s71
      %p85 = scmp.eq.s32.totalorder %s21, 1
      %p86 = por %p84, %p85
      %p88 = scmp.ne.s32.totalorder %s71, %s87
      %p89 = scmp.eq.s32.totalorder %s21, 0
      %p90 = por %p88, %p89
      %s91 = ssub.s32 %s22, %s34
      %s92 = ssub.s32 %s23, %s30
      %s93 = sor.u32 %s91, %s92
      %p94 = scmp.eq.s32.totalorder %s93, 0
      %s96 = sadd.s32 %s95, 1
      %s97 = scalar_select %p94, %s95, %s96
      %p100 = pneg %p94
      %p101 = scmp.eq.s32.totalorder %s15, 1
      %p102 = por %p100, %p101
      %p103 = scmp.ne.s32.totalorder %s95, %s98
      %p104 = scmp.eq.s32.totalorder %s15, 0
      %p105 = por %p103, %p104
      %p106 = scmp.ne.s32.totalorder %s95, %s98
      %p107 = scmp.eq.s32.totalorder %s20, 1
      %p108 = por %p106, %p107
      %p109 = scmp.ne.s32.totalorder %s98, %s99
      %p110 = scmp.eq.s32.totalorder %s20, 0
      %p111 = por %p109, %p110
      %p112 = scmp.ne.s32.totalorder %s98, %s99
      %p113 = scmp.eq.s32.totalorder %s21, 1
      %p114 = por %p112, %p113
      %p116 = scmp.ne.s32.totalorder %s99, %s115
      %p117 = scmp.eq.s32.totalorder %s21, 0
      %p118 = por %p116, %p117
      %s119 = ssub.s32 %s22, %s34
      %p120 = scmp.eq.s32.totalorder %s119, 0
      %s122 = sadd.s32 %s121, 1
      %s123 = scalar_select %p120, %s121, %s122
      %p126 = pneg %p120
      %p127 = scmp.eq.s32.totalorder %s15, 1
      %p128 = por %p126, %p127
      %p129 = scmp.ne.s32.totalorder %s121, %s124
      %p130 = scmp.eq.s32.totalorder %s15, 0
      %p131 = por %p129, %p130
      %p132 = scmp.ne.s32.totalorder %s121, %s124
      %p133 = scmp.eq.s32.totalorder %s20, 1
      %p134 = por %p132, %p133
      %p135 = scmp.ne.s32.totalorder %s124, %s125
      %p136 = scmp.eq.s32.totalorder %s20, 0
      %p137 = por %p135, %p136
      %p138 = scmp.ne.s32.totalorder %s124, %s125
      %p139 = scmp.eq.s32.totalorder %s21, 1
      %p140 = por %p138, %p139
      %p142 = scmp.ne.s32.totalorder %s125, %s141
      %p143 = scmp.eq.s32.totalorder %s21, 0
      %p144 = por %p142, %p143
      %p145 = scmp.le.s32.totalorder 1, %s15
      %p146 = scmp.lt.s32.totalorder %s15, 3
      %p147 = pnand %p145, %p146
      %p148 = pneg %p147
      // Predicated region
      $region9: #{scale_and_shift_invariant_loss.2} parent=5 // pred_check
        _
      $region10: #{scale_and_shift_invariant_loss.2} parent=5 // pred_check_branch
        %150 = sbr.rel (%p147) target = $region12
      $region11: #{scale_and_shift_invariant_loss.2} parent=5 // pred_region
        %s151 = ssub.s32 %s15, 1
      $region12: #{scale_and_shift_invariant_loss.2} parent=5 // pred_fallthru
        _
      %p152 = scmp.lt.s32.totalorder %s15, 2
      // Predicated region
      $region13: #{scale_and_shift_invariant_loss.2} parent=5 // pred_check
        %p153 = pneg %p152
      $region14: #{scale_and_shift_invariant_loss.2} parent=5 // pred_check_branch
        %155 = sbr.rel (%p153) target = $region16
      $region15: #{scale_and_shift_invariant_loss.2} parent=5 // pred_region
        // Predicated region
        $region17: #{scale_and_shift_invariant_loss.2} parent=15 // pred_check
          %p156 = pneg %p49
        $region18: #{scale_and_shift_invariant_loss.2} parent=15 // pred_check_branch
          %158 = sbr.rel (%p156) target = $region20
        $region19: #{scale_and_shift_invariant_loss.2} parent=15 // pred_region
          %s159 = sand.u32 %s39, 1
          %s160 = scalar_lea.sflag [#allocation3], %s159
          %s161 = sand.u32 %s39, 1
          %s162 = smul.addr %s161, 32
          %s163 = scalar_lea.vmem [#allocation2], %s162
          %s164 = smul.u32 4, %s23
          %s166 = ssub.s32 512, 512
          %167 = vsyncadd %s160, %s166
          %s168 = smul.addr %s22, 4
          %s169 = sadd.s32 %s164, %s168
          %s170 = smul.addr %s169, 128
          %s171 = scalar_lea.hbm %s0, %s170
          %s172 = sshll.u32 %s163, 4
          %s173 = int_to_ptr.vmem [resolvable:$true] %s172
          %178 = dma.hbm_to_vmem [thread:$0]  %s171, 512, %s173, %s160, 128, 128, 8
        $region20: #{scale_and_shift_invariant_loss.2} parent=15 // pred_fallthru
          _
        // Predicated region
        $region21: #{scale_and_shift_invariant_loss.2} parent=15 // pred_check
          %p179 = pneg %p77
        $region22: #{scale_and_shift_invariant_loss.2} parent=15 // pred_check_branch
          %181 = sbr.rel (%p179) target = $region24
        $region23: #{scale_and_shift_invariant_loss.2} parent=15 // pred_region
          %s182 = sand.u32 %s15, 1
          %s183 = scalar_lea.sflag [#allocation5], %s182
          %s184 = sand.u32 %s67, 1
          %s185 = smul.addr %s184, 32
          %s186 = scalar_lea.vmem [#allocation4], %s185
          %s187 = smul.u32 4, %s23
          %s189 = ssub.s32 512, 512
          %190 = vsyncadd %s183, %s189
          %s191 = smul.addr %s22, 4
          %s192 = sadd.s32 %s187, %s191
          %s193 = smul.addr %s192, 128
          %s194 = scalar_lea.hbm %s1, %s193
          %s195 = sshll.u32 %s186, 4
          %s196 = int_to_ptr.vmem [resolvable:$true] %s195
          %201 = dma.hbm_to_vmem [thread:$0]  %s194, 512, %s196, %s183, 128, 128, 8
        $region24: #{scale_and_shift_invariant_loss.2} parent=15 // pred_fallthru
          _
        // Predicated region
        $region25: #{scale_and_shift_invariant_loss.2} parent=15 // pred_check
          %p202 = pneg %p105
        $region26: #{scale_and_shift_invariant_loss.2} parent=15 // pred_check_branch
          %204 = sbr.rel (%p202) target = $region28
        $region27: #{scale_and_shift_invariant_loss.2} parent=15 // pred_region
          %s205 = sand.u32 %s15, 1
          %s206 = scalar_lea.sflag [#allocation5], %s205
          %s207 = sand.u32 %s95, 1
          %s208 = smul.addr %s207, 32
          %s209 = scalar_lea.vmem [#allocation6], %s208
          %s210 = smul.u32 4, %s23
          %s212 = ssub.s32 512, 512
          %213 = vsyncadd %s206, %s212
          %s214 = smul.addr %s22, 4
          %s215 = sadd.s32 %s210, %s214
          %s216 = smul.addr %s215, 128
          %s217 = scalar_lea.hbm %s2, %s216
          %s218 = sshll.u32 %s209, 4
          %s219 = int_to_ptr.vmem [resolvable:$true] %s218
          %224 = dma.hbm_to_vmem [thread:$0]  %s217, 512, %s219, %s206, 128, 128, 8
        $region28: #{scale_and_shift_invariant_loss.2} parent=15 // pred_fallthru
          _
      $region16: #{scale_and_shift_invariant_loss.2} parent=5 // pred_fallthru
        _
      %p225 = scmp.le.s32.totalorder 1, %s15
      %p226 = scmp.lt.s32.totalorder %s15, 3
      %p227 = pnand %p225, %p226
      %p228 = pneg %p227
      // Predicated region
      $region29: #{scale_and_shift_invariant_loss.2} parent=5 // pred_check
        _
      $region30: #{scale_and_shift_invariant_loss.2} parent=5 // pred_check_branch
        %230 = sbr.rel (%p227) target = $region32
      $region31: #{scale_and_shift_invariant_loss.2} parent=5 // pred_region
        %s231 = ssub.s32 %s15, 1
        %s232 = sand.u32 %s42, 1
        %s233 = scalar_lea.sflag [#allocation3], %s232
        %s234 = sand.u32 %s42, 1
        %s235 = smul.addr %s234, 32
        %s236 = scalar_lea.vmem [#allocation2], %s235
        // Predicated region
        $region33: #{scale_and_shift_invariant_loss.2} parent=31 // pred_check
          %p237 = pneg %p55
        $region34: #{scale_and_shift_invariant_loss.2} parent=31 // pred_check_branch
          %239 = sbr.rel (%p237) target = $region36
        $region35: #{scale_and_shift_invariant_loss.2} parent=31 // pred_region
          %240 = dma.done %s233, 512
        $region36: #{scale_and_shift_invariant_loss.2} parent=31 // pred_fallthru
          _
        %s241 = sand.u32 %s20, 1
        %s242 = scalar_lea.sflag [#allocation5], %s241
        %s243 = sand.u32 %s70, 1
        %s244 = smul.addr %s243, 32
        %s245 = scalar_lea.vmem [#allocation4], %s244
        // Predicated region
        $region37: #{scale_and_shift_invariant_loss.2} parent=31 // pred_check
          %p246 = pneg %p83
        $region38: #{scale_and_shift_invariant_loss.2} parent=31 // pred_check_branch
          %248 = sbr.rel (%p246) target = $region40
        $region39: #{scale_and_shift_invariant_loss.2} parent=31 // pred_region
          %249 = dma.done %s242, 512
        $region40: #{scale_and_shift_invariant_loss.2} parent=31 // pred_fallthru
          _
        %s250 = sand.u32 %s20, 1
        %s251 = scalar_lea.sflag [#allocation5], %s250
        %s252 = sand.u32 %s98, 1
        %s253 = smul.addr %s252, 32
        %s254 = scalar_lea.vmem [#allocation6], %s253
        // Predicated region
        $region41: #{scale_and_shift_invariant_loss.2} parent=31 // pred_check
          %p255 = pneg %p111
        $region42: #{scale_and_shift_invariant_loss.2} parent=31 // pred_check_branch
          %257 = sbr.rel (%p255) target = $region44
        $region43: #{scale_and_shift_invariant_loss.2} parent=31 // pred_region
          %258 = dma.done %s251, 512
        $region44: #{scale_and_shift_invariant_loss.2} parent=31 // pred_fallthru
          _
        %s259 = sand.u32 %s42, 1
        %s260 = scalar_lea.sflag [#allocation3], %s259
        %s261 = sand.u32 %s42, 1
        %s262 = smul.addr %s261, 32
        %s263 = scalar_lea.vmem [#allocation2], %s262
        %p264 = pneg %p55
        %p265 = pneg %p52
        %s266 = sand.u32 %s20, 1
        %s267 = scalar_lea.sflag [#allocation5], %s266
        %s268 = sand.u32 %s70, 1
        %s269 = smul.addr %s268, 32
        %s270 = scalar_lea.vmem [#allocation4], %s269
        %p271 = pneg %p83
        %p272 = pneg %p80
        %s273 = sand.u32 %s20, 1
        %s274 = scalar_lea.sflag [#allocation5], %s273
        %s275 = sand.u32 %s98, 1
        %s276 = smul.addr %s275, 32
        %s277 = scalar_lea.vmem [#allocation6], %s276
        %p278 = pneg %p111
        %p279 = pneg %p108
        %p280 = pneg %p137
        %p281 = pneg %p134
        %p282 = scmp.lt.s32.totalorder %s24, 1
        %s283 = scalar_select %p282, %s24, 1
        %s284 = smul.addr %s283, 8
        %s285 = scalar_lea.vmem %s3, %s284
        %s286 = smul.u32 4, %s25
        %s287 = smul.u32 4, %s25
        %s288 = smul.u32 4, %s25
        %p289 = scmp.lt.s32.totalorder %s24, 1
        %s290 = scalar_select %p289, %s24, 1
        %s291 = smul.addr %s290, 8
        %s292 = scalar_lea.vmem %s3, %s291
        %v293 = vld [vmem:[%s236] sm:$0xff]
        %v294 = vld [vmem:[%s236 + $0x8] sm:$0xff]
        %v295 = vld [vmem:[%s236 + $0x10] sm:$0xff]
        %v296 = vld [vmem:[%s236 + $0x18] sm:$0xff]
        %v297 = vld [vmem:[%s245] sm:$0xff]
        %v298 = vld [vmem:[%s245 + $0x8] sm:$0xff]
        %v299 = vld [vmem:[%s245 + $0x10] sm:$0xff]
        %v300 = vld [vmem:[%s245 + $0x18] sm:$0xff]
        %v301 = vld [vmem:[%s254] sm:$0xff]
        %v302 = vld [vmem:[%s254 + $0x8] sm:$0xff]
        %v303 = vld [vmem:[%s254 + $0x10] sm:$0xff]
        %v304 = vld [vmem:[%s254 + $0x18] sm:$0xff]
        %v305 = vmul.f32 %v301, %v293
        %v306 = vmul.f32 %v302, %v294
        %v307 = vmul.f32 %v303, %v295
        %v308 = vmul.f32 %v304, %v296
        %v309 = vmul.f32 %v305, %v293
        %v310 = vmul.f32 %v306, %v294
        %v311 = vmul.f32 %v307, %v295
        %v312 = vmul.f32 %v308, %v296
        %vm313 = vcmask 261120
        %v314 = vsel %vm313, %v309, 0.0
        %v315 = vsel %vm313, %v310, 0.0
        %v316 = vadd.f32 %v314, %v315
        %v317 = vsel %vm313, %v311, 0.0
        %v318 = vadd.f32 %v316, %v317
        %v319 = vsel %vm313, %v312, 0.0
        %v320 = vadd.f32 %v318, %v319
        %321 = vadd.xlane.f32.xlu0 %v320
        %v322 = vpop.xlane.xlu0 %321
        %v323 = vrot.slane %v322, 4
        %v324 = vadd.f32 %v322, %v323
        %v325 = vrot.slane %v324, 2
        %v326 = vadd.f32 %v324, %v325
        %v327 = vrot.slane %v326, 1
        %v328 = vadd.f32 %v326, %v327
        %s329 = vtos %v328
        %v330 = vstv %s329
        %v331 = vsel %vm313, %v305, 0.0
        %v332 = vsel %vm313, %v306, 0.0
        %v333 = vadd.f32 %v331, %v332
        %v334 = vsel %vm313, %v307, 0.0
        %v335 = vadd.f32 %v333, %v334
        %v336 = vsel %vm313, %v308, 0.0
        %v337 = vadd.f32 %v335, %v336
        %338 = vadd.xlane.f32.xlu0 %v337
        %v339 = vpop.xlane.xlu0 %338
        %v340 = vrot.slane %v339, 4
        %v341 = vadd.f32 %v339, %v340
        %v342 = vrot.slane %v341, 2
        %v343 = vadd.f32 %v341, %v342
        %v344 = vrot.slane %v343, 1
        %v345 = vadd.f32 %v343, %v344
        %s346 = vtos %v345
        %v347 = vstv %s346
        %v348 = vsel %vm313, %v301, 0.0
        %v349 = vsel %vm313, %v302, 0.0
        %v350 = vadd.f32 %v348, %v349
        %v351 = vsel %vm313, %v303, 0.0
        %v352 = vadd.f32 %v350, %v351
        %v353 = vsel %vm313, %v304, 0.0
        %v354 = vadd.f32 %v352, %v353
        %355 = vadd.xlane.f32.xlu0 %v354
        %v356 = vpop.xlane.xlu0 %355
        %v357 = vrot.slane %v356, 4
        %v358 = vadd.f32 %v356, %v357
        %v359 = vrot.slane %v358, 2
        %v360 = vadd.f32 %v358, %v359
        %v361 = vrot.slane %v360, 1
        %v362 = vadd.f32 %v360, %v361
        %s363 = vtos %v362
        %v364 = vstv %s363
        %v365 = vmul.f32 %v305, %v297
        %v366 = vmul.f32 %v306, %v298
        %v367 = vmul.f32 %v307, %v299
        %v368 = vmul.f32 %v308, %v300
        %v369 = vsel %vm313, %v365, 0.0
        %v370 = vsel %vm313, %v366, 0.0
        %v371 = vadd.f32 %v369, %v370
        %v372 = vsel %vm313, %v367, 0.0
        %v373 = vadd.f32 %v371, %v372
        %v374 = vsel %vm313, %v368, 0.0
        %v375 = vadd.f32 %v373, %v374
        %376 = vadd.xlane.f32.xlu0 %v375
        %v377 = vpop.xlane.xlu0 %376
        %v378 = vrot.slane %v377, 4
        %v379 = vadd.f32 %v377, %v378
        %v380 = vrot.slane %v379, 2
        %v381 = vadd.f32 %v379, %v380
        %v382 = vrot.slane %v381, 1
        %v383 = vadd.f32 %v381, %v382
        %s384 = vtos %v383
        %v385 = vstv %s384
        %v386 = vmul.f32 %v301, %v297
        %v387 = vmul.f32 %v302, %v298
        %v388 = vmul.f32 %v303, %v299
        %v389 = vmul.f32 %v304, %v300
        %v390 = vsel %vm313, %v386, 0.0
        %v391 = vsel %vm313, %v387, 0.0
        %v392 = vadd.f32 %v390, %v391
        %v393 = vsel %vm313, %v388, 0.0
        %v394 = vadd.f32 %v392, %v393
        %v395 = vsel %vm313, %v389, 0.0
        %v396 = vadd.f32 %v394, %v395
        %397 = vadd.xlane.f32.xlu0 %v396
        %v398 = vpop.xlane.xlu0 %397
        %v399 = vrot.slane %v398, 4
        %v400 = vadd.f32 %v398, %v399
        %v401 = vrot.slane %v400, 2
        %v402 = vadd.f32 %v400, %v401
        %v403 = vrot.slane %v402, 1
        %v404 = vadd.f32 %v402, %v403
        %s405 = vtos %v404
        %v406 = vstv %s405
        %vm407 = vcmask 7168
        %v408 = vsel %vm407, %v330, %v347
        %vm409 = vcmask 15360
        %v410 = vsel %vm409, %v408, %v364
        %vm411 = vcmask 23552
        %v412 = vsel %vm411, %v410, %v385
        %vm413 = vcmask 31744
        %v414 = vsel %vm413, %v412, %v406
        %p415 = scmp.eq.s32.totalorder %s25, 0
        // Predicated region
        $region45: #{scale_and_shift_invariant_loss.2} parent=31 // pred_check
          %p416 = pneg %p415
        $region46: #{scale_and_shift_invariant_loss.2} parent=31 // pred_check_branch
          %418 = sbr.rel (%p416) target = $region48
        $region47: #{scale_and_shift_invariant_loss.2} parent=31 // pred_region
          %419 = vst [vmem:[%s292] sm:$0xff] 0.0
        $region48: #{scale_and_shift_invariant_loss.2} parent=31 // pred_fallthru
          _
        %v420 = vld [vmem:[%s292] sm:$0x1]
        %v421 = vadd.f32 %v420, %v414
        %vm422 = vcmask 32768
        %423 = vst.msk [vmem:[%s292] sm:$0x1] %vm422, %v421
        %p424 = scmp.lt.s32.totalorder %s24, 1
        %s425 = scalar_select %p424, %s24, 1
        %s426 = smul.addr %s425, 8
        %s427 = scalar_lea.vmem %s3, %s426
        // Predicated region
        $region49: #{scale_and_shift_invariant_loss.2} parent=31 // pred_check
          %p428 = pneg %p134
        $region50: #{scale_and_shift_invariant_loss.2} parent=31 // pred_check_branch
          %430 = sbr.rel (%p428) target = $region52
        $region51: #{scale_and_shift_invariant_loss.2} parent=31 // pred_region
          _
        $region52: #{scale_and_shift_invariant_loss.2} parent=31 // pred_fallthru
          _
      $region32: #{scale_and_shift_invariant_loss.2} parent=5 // pred_fallthru
        _
      %p431 = scmp.le.s32.totalorder 2, %s15
      // Predicated region
      $region53: #{scale_and_shift_invariant_loss.2} parent=5 // pred_check
        %p432 = pneg %p431
      $region54: #{scale_and_shift_invariant_loss.2} parent=5 // pred_check_branch
        %434 = sbr.rel (%p432) target = $region56
      $region55: #{scale_and_shift_invariant_loss.2} parent=5 // pred_region
        %s435 = ssub.s32 %s15, 2
        // Predicated region
        $region57: #{scale_and_shift_invariant_loss.2} parent=55 // pred_check
          %p436 = pneg %p140
        $region58: #{scale_and_shift_invariant_loss.2} parent=55 // pred_check_branch
          %438 = sbr.rel (%p436) target = $region60
        $region59: #{scale_and_shift_invariant_loss.2} parent=55 // pred_region
          %p439 = scmp.lt.s32.totalorder %s26, 1
          %s440 = scalar_select %p439, %s26, 1
          %s441 = smul.addr %s440, 8
          %s442 = scalar_lea.vmem %s3, %s441
        $region60: #{scale_and_shift_invariant_loss.2} parent=55 // pred_fallthru
          _
      $region56: #{scale_and_shift_invariant_loss.2} parent=5 // pred_fallthru
        _
    $region6: #{scale_and_shift_invariant_loss.2} parent=1 // loop_footer
      %s19 = sadd.s32 1, %s15
    $region7: #{scale_and_shift_invariant_loss.2} parent=1 // loop_footer_branch
      %14 = sbr.rel target = $region3
    $region8: #{scale_and_shift_invariant_loss.2} parent=1 // loop_exit
      _
    %443 = vsyncpa [#allocation3], 1
    %s444 = scalar_lea.sflag [#allocation3], 1
    %445 = vsyncpa %s444, 1
    %446 = vsyncpa [#allocation5], 1
    %s447 = scalar_lea.sflag [#allocation5], 1
    %448 = vsyncpa %s447, 1

// kernel: scale_and_shift_invariant_loss.3
$region0: #{scale_and_shift_invariant_loss.3}
  #allocation0 [shape = 'u32[]', space=smem, size = 0x4, offset = 0x4, fixed_abs, tag = 'smem constant byte address 0x4 - core index']
  #allocation1 [shape = 'u32[144,128]{1,0:T(1,128)}', space=vmem, size = 0x12000, scoped, tag = 'internal scratch']
  #allocation2 [shape = 'f32[8,32]{1,0:T(8,128)}', space=vmem, size = 0x1000, scoped, tag = 'scratch operand']
  #allocation3 [shape = 'f32[8,32]{1,0:T(8,128)}', space=vmem, size = 0x1000, scoped, tag = 'scratch operand']
  %s0 = inlined_call_operand.vmem [shape: f32[2,32,32], index: 0, kind: input, shape index: {}]
  %s1 = inlined_call_operand.vmem [shape: f32[2,32,32], index: 1, kind: input, shape index: {}]
  %s2 = inlined_call_operand.vmem [shape: f32[2,32,32], index: 2, kind: input, shape index: {}]
  %s3 = inlined_call_operand.vmem [shape: f32[2,1,1], index: 3, kind: input, shape index: {}]
  %s4 = inlined_call_operand.vmem [shape: f32[2,1,1], index: 4, kind: input, shape index: {}]
  %s5 = inlined_call_operand.vmem [shape: f32[2,8,128], index: 5, kind: output, shape index: {}]
  %s6 = sld [smem:[#allocation0]]
  $region57: #{scale_and_shift_invariant_loss.3} parent=0
    _
  %s8 = ssub.s32 1, %s6
  %s9 = scalar_select 0, %s8, %s6
  loop: start=0, step=1, limit=4
  $region2: #{scale_and_shift_invariant_loss.3} parent=0 // loop_pre_header
    _
  $region3: #{scale_and_shift_invariant_loss.3} parent=0 // loop_header
    %s11 = sphi 0, %s15
    %p12 = scmp.ge.s32.totalorder %s11, 4
    %s18 = sphi 0, %s30
    %s19 = sphi 0, %s26
    %s20 = sphi 0, %s18
    %s21 = sphi 0, %s19
    %s22 = sphi 0, %s20
    %s23 = sphi 0, %s21
    %s35 = sphi 0, %s37
    %s38 = sphi 0, %s35
    %s39 = sphi 0, %s38
    %s55 = sphi 0, %s39
    %s63 = sphi 0, %s65
    %s66 = sphi 0, %s63
    %s67 = sphi 0, %s66
    %s83 = sphi 0, %s67
    %s91 = sphi 0, %s93
    %s94 = sphi 0, %s91
    %s95 = sphi 0, %s94
    %s111 = sphi 0, %s95
    %s117 = sphi 0, %s119
    %s120 = sphi 0, %s117
    %s121 = sphi 0, %s120
    %s137 = sphi 0, %s121
    %s143 = sphi 0, %s145
    %s146 = sphi 0, %s143
    %s147 = sphi 0, %s146
    %s163 = sphi 0, %s147
    %s169 = sphi 0, %s171
    %s172 = sphi 0, %s169
    %s173 = sphi 0, %s172
    %s189 = sphi 0, %s173
  $region4: #{scale_and_shift_invariant_loss.3} parent=0 // loop_header_branch
    %14 = sbr.rel (%p12) target = $region8
  $region5: #{scale_and_shift_invariant_loss.3} parent=0 // loop_body
    %s16 = ssub.s32 %s11, 1
    %s17 = ssub.s32 %s11, 2
    %s24 = sadd.s32 1, %s19
    %p25 = scmp.ge.s32.totalorder %s24, 1
    %s26 = scalar_select %p25, 0, %s24
    %s27 = sadd.s32 1, %s18
    %s28 = scalar_select %p25, %s27, %s18
    %p29 = scmp.ge.s32.totalorder %s28, 2
    %s30 = scalar_select %p29, 0, %s28
    %s31 = ssub.s32 %s18, %s30
    %s32 = ssub.s32 %s19, %s26
    %s33 = sor.u32 %s31, %s32
    %p34 = scmp.eq.s32.totalorder %s33, 0
    %s36 = sadd.s32 %s35, 1
    %s37 = scalar_select %p34, %s35, %s36
    %p40 = pneg %p34
    %p41 = scmp.eq.s32.totalorder %s11, 1
    %p42 = por %p40, %p41
    %p43 = scmp.ne.s32.totalorder %s35, %s38
    %p44 = scmp.eq.s32.totalorder %s11, 0
    %p45 = por %p43, %p44
    %p46 = scmp.ne.s32.totalorder %s35, %s38
    %p47 = scmp.eq.s32.totalorder %s16, 1
    %p48 = por %p46, %p47
    %p49 = scmp.ne.s32.totalorder %s38, %s39
    %p50 = scmp.eq.s32.totalorder %s16, 0
    %p51 = por %p49, %p50
    %p52 = scmp.ne.s32.totalorder %s38, %s39
    %p53 = scmp.eq.s32.totalorder %s17, 1
    %p54 = por %p52, %p53
    %p56 = scmp.ne.s32.totalorder %s39, %s55
    %p57 = scmp.eq.s32.totalorder %s17, 0
    %p58 = por %p56, %p57
    %s59 = ssub.s32 %s18, %s30
    %s60 = ssub.s32 %s19, %s26
    %s61 = sor.u32 %s59, %s60
    %p62 = scmp.eq.s32.totalorder %s61, 0
    %s64 = sadd.s32 %s63, 1
    %s65 = scalar_select %p62, %s63, %s64
    %p68 = pneg %p62
    %p69 = scmp.eq.s32.totalorder %s11, 1
    %p70 = por %p68, %p69
    %p71 = scmp.ne.s32.totalorder %s63, %s66
    %p72 = scmp.eq.s32.totalorder %s11, 0
    %p73 = por %p71, %p72
    %p74 = scmp.ne.s32.totalorder %s63, %s66
    %p75 = scmp.eq.s32.totalorder %s16, 1
    %p76 = por %p74, %p75
    %p77 = scmp.ne.s32.totalorder %s66, %s67
    %p78 = scmp.eq.s32.totalorder %s16, 0
    %p79 = por %p77, %p78
    %p80 = scmp.ne.s32.totalorder %s66, %s67
    %p81 = scmp.eq.s32.totalorder %s17, 1
    %p82 = por %p80, %p81
    %p84 = scmp.ne.s32.totalorder %s67, %s83
    %p85 = scmp.eq.s32.totalorder %s17, 0
    %p86 = por %p84, %p85
    %s87 = ssub.s32 %s18, %s30
    %s88 = ssub.s32 %s19, %s26
    %s89 = sor.u32 %s87, %s88
    %p90 = scmp.eq.s32.totalorder %s89, 0
    %s92 = sadd.s32 %s91, 1
    %s93 = scalar_select %p90, %s91, %s92
    %p96 = pneg %p90
    %p97 = scmp.eq.s32.totalorder %s11, 1
    %p98 = por %p96, %p97
    %p99 = scmp.ne.s32.totalorder %s91, %s94
    %p100 = scmp.eq.s32.totalorder %s11, 0
    %p101 = por %p99, %p100
    %p102 = scmp.ne.s32.totalorder %s91, %s94
    %p103 = scmp.eq.s32.totalorder %s16, 1
    %p104 = por %p102, %p103
    %p105 = scmp.ne.s32.totalorder %s94, %s95
    %p106 = scmp.eq.s32.totalorder %s16, 0
    %p107 = por %p105, %p106
    %p108 = scmp.ne.s32.totalorder %s94, %s95
    %p109 = scmp.eq.s32.totalorder %s17, 1
    %p110 = por %p108, %p109
    %p112 = scmp.ne.s32.totalorder %s95, %s111
    %p113 = scmp.eq.s32.totalorder %s17, 0
    %p114 = por %p112, %p113
    %s115 = ssub.s32 %s18, %s30
    %p116 = scmp.eq.s32.totalorder %s115, 0
    %s118 = sadd.s32 %s117, 1
    %s119 = scalar_select %p116, %s117, %s118
    %p122 = pneg %p116
    %p123 = scmp.eq.s32.totalorder %s11, 1
    %p124 = por %p122, %p123
    %p125 = scmp.ne.s32.totalorder %s117, %s120
    %p126 = scmp.eq.s32.totalorder %s11, 0
    %p127 = por %p125, %p126
    %p128 = scmp.ne.s32.totalorder %s117, %s120
    %p129 = scmp.eq.s32.totalorder %s16, 1
    %p130 = por %p128, %p129
    %p131 = scmp.ne.s32.totalorder %s120, %s121
    %p132 = scmp.eq.s32.totalorder %s16, 0
    %p133 = por %p131, %p132
    %p134 = scmp.ne.s32.totalorder %s120, %s121
    %p135 = scmp.eq.s32.totalorder %s17, 1
    %p136 = por %p134, %p135
    %p138 = scmp.ne.s32.totalorder %s121, %s137
    %p139 = scmp.eq.s32.totalorder %s17, 0
    %p140 = por %p138, %p139
    %s141 = ssub.s32 %s18, %s30
    %p142 = scmp.eq.s32.totalorder %s141, 0
    %s144 = sadd.s32 %s143, 1
    %s145 = scalar_select %p142, %s143, %s144
    %p148 = pneg %p142
    %p149 = scmp.eq.s32.totalorder %s11, 1
    %p150 = por %p148, %p149
    %p151 = scmp.ne.s32.totalorder %s143, %s146
    %p152 = scmp.eq.s32.totalorder %s11, 0
    %p153 = por %p151, %p152
    %p154 = scmp.ne.s32.totalorder %s143, %s146
    %p155 = scmp.eq.s32.totalorder %s16, 1
    %p156 = por %p154, %p155
    %p157 = scmp.ne.s32.totalorder %s146, %s147
    %p158 = scmp.eq.s32.totalorder %s16, 0
    %p159 = por %p157, %p158
    %p160 = scmp.ne.s32.totalorder %s146, %s147
    %p161 = scmp.eq.s32.totalorder %s17, 1
    %p162 = por %p160, %p161
    %p164 = scmp.ne.s32.totalorder %s147, %s163
    %p165 = scmp.eq.s32.totalorder %s17, 0
    %p166 = por %p164, %p165
    %s167 = ssub.s32 %s18, %s30
    %p168 = scmp.eq.s32.totalorder %s167, 0
    %s170 = sadd.s32 %s169, 1
    %s171 = scalar_select %p168, %s169, %s170
    %p174 = pneg %p168
    %p175 = scmp.eq.s32.totalorder %s11, 1
    %p176 = por %p174, %p175
    %p177 = scmp.ne.s32.totalorder %s169, %s172
    %p178 = scmp.eq.s32.totalorder %s11, 0
    %p179 = por %p177, %p178
    %p180 = scmp.ne.s32.totalorder %s169, %s172
    %p181 = scmp.eq.s32.totalorder %s16, 1
    %p182 = por %p180, %p181
    %p183 = scmp.ne.s32.totalorder %s172, %s173
    %p184 = scmp.eq.s32.totalorder %s16, 0
    %p185 = por %p183, %p184
    %p186 = scmp.ne.s32.totalorder %s172, %s173
    %p187 = scmp.eq.s32.totalorder %s17, 1
    %p188 = por %p186, %p187
    %p190 = scmp.ne.s32.totalorder %s173, %s189
    %p191 = scmp.eq.s32.totalorder %s17, 0
    %p192 = por %p190, %p191
    %p193 = scmp.le.s32.totalorder 1, %s11
    %p194 = scmp.lt.s32.totalorder %s11, 3
    %p195 = pnand %p193, %p194
    %p196 = pneg %p195
    // Predicated region
    $region9: #{scale_and_shift_invariant_loss.3} parent=5 // pred_check
      _
    $region10: #{scale_and_shift_invariant_loss.3} parent=5 // pred_check_branch
      %198 = sbr.rel (%p195) target = $region12
    $region11: #{scale_and_shift_invariant_loss.3} parent=5 // pred_region
      %s199 = ssub.s32 %s11, 1
    $region12: #{scale_and_shift_invariant_loss.3} parent=5 // pred_fallthru
      _
    %p200 = scmp.lt.s32.totalorder %s11, 2
    // Predicated region
    $region13: #{scale_and_shift_invariant_loss.3} parent=5 // pred_check
      %p201 = pneg %p200
    $region14: #{scale_and_shift_invariant_loss.3} parent=5 // pred_check_branch
      %203 = sbr.rel (%p201) target = $region16
    $region15: #{scale_and_shift_invariant_loss.3} parent=5 // pred_region
      // Predicated region
      $region17: #{scale_and_shift_invariant_loss.3} parent=15 // pred_check
        %p204 = pneg %p45
      $region18: #{scale_and_shift_invariant_loss.3} parent=15 // pred_check_branch
        %206 = sbr.rel (%p204) target = $region20
      $region19: #{scale_and_shift_invariant_loss.3} parent=15 // pred_region
        %s207 = smul.u32 4, %s19
        %p208 = scmp.lt.s32.totalorder %s18, 1
        %s209 = scalar_select %p208, %s18, 1
        %p210 = scmp.lt.s32.totalorder %s207, 3
        %s211 = scalar_select %p210, %s207, 3
        %s212 = smul.addr %s209, 4
        %s213 = sadd.s32 %s211, %s212
        %s214 = smul.addr %s213, 8
        %s215 = scalar_lea.vmem %s0, %s214
        %s216 = smul.u32 4, %s19
      $region20: #{scale_and_shift_invariant_loss.3} parent=15 // pred_fallthru
        _
      // Predicated region
      $region21: #{scale_and_shift_invariant_loss.3} parent=15 // pred_check
        %p217 = pneg %p73
      $region22: #{scale_and_shift_invariant_loss.3} parent=15 // pred_check_branch
        %219 = sbr.rel (%p217) target = $region24
      $region23: #{scale_and_shift_invariant_loss.3} parent=15 // pred_region
        %s220 = smul.u32 4, %s19
        %p221 = scmp.lt.s32.totalorder %s18, 1
        %s222 = scalar_select %p221, %s18, 1
        %p223 = scmp.lt.s32.totalorder %s220, 3
        %s224 = scalar_select %p223, %s220, 3
        %s225 = smul.addr %s222, 4
        %s226 = sadd.s32 %s224, %s225
        %s227 = smul.addr %s226, 8
        %s228 = scalar_lea.vmem %s1, %s227
        %s229 = smul.u32 4, %s19
      $region24: #{scale_and_shift_invariant_loss.3} parent=15 // pred_fallthru
        _
      // Predicated region
      $region25: #{scale_and_shift_invariant_loss.3} parent=15 // pred_check
        %p230 = pneg %p101
      $region26: #{scale_and_shift_invariant_loss.3} parent=15 // pred_check_branch
        %232 = sbr.rel (%p230) target = $region28
      $region27: #{scale_and_shift_invariant_loss.3} parent=15 // pred_region
        %s233 = smul.u32 4, %s19
        %p234 = scmp.lt.s32.totalorder %s18, 1
        %s235 = scalar_select %p234, %s18, 1
        %p236 = scmp.lt.s32.totalorder %s233, 3
        %s237 = scalar_select %p236, %s233, 3
        %s238 = smul.addr %s235, 4
        %s239 = sadd.s32 %s237, %s238
        %s240 = smul.addr %s239, 8
        %s241 = scalar_lea.vmem %s2, %s240
        %s242 = smul.u32 4, %s19
      $region28: #{scale_and_shift_invariant_loss.3} parent=15 // pred_fallthru
        _
      // Predicated region
      $region29: #{scale_and_shift_invariant_loss.3} parent=15 // pred_check
        %p243 = pneg %p127
      $region30: #{scale_and_shift_invariant_loss.3} parent=15 // pred_check_branch
        %245 = sbr.rel (%p243) target = $region32
      $region31: #{scale_and_shift_invariant_loss.3} parent=15 // pred_region
        %p246 = scmp.lt.s32.totalorder %s18, 1
        %s247 = scalar_select %p246, %s18, 1
        %s248 = scalar_lea.vmem %s3, %s247
      $region32: #{scale_and_shift_invariant_loss.3} parent=15 // pred_fallthru
        _
      // Predicated region
      $region33: #{scale_and_shift_invariant_loss.3} parent=15 // pred_check
        %p249 = pneg %p153
      $region34: #{scale_and_shift_invariant_loss.3} parent=15 // pred_check_branch
        %251 = sbr.rel (%p249) target = $region36
      $region35: #{scale_and_shift_invariant_loss.3} parent=15 // pred_region
        %p252 = scmp.lt.s32.totalorder %s18, 1
        %s253 = scalar_select %p252, %s18, 1
        %s254 = scalar_lea.vmem %s4, %s253
      $region36: #{scale_and_shift_invariant_loss.3} parent=15 // pred_fallthru
        _
    $region16: #{scale_and_shift_invariant_loss.3} parent=5 // pred_fallthru
      _
    %p255 = scmp.le.s32.totalorder 1, %s11
    %p256 = scmp.lt.s32.totalorder %s11, 3
    %p257 = pnand %p255, %p256
    %p258 = pneg %p257
    // Predicated region
    $region37: #{scale_and_shift_invariant_loss.3} parent=5 // pred_check
      _
    $region38: #{scale_and_shift_invariant_loss.3} parent=5 // pred_check_branch
      %260 = sbr.rel (%p257) target = $region40
    $region39: #{scale_and_shift_invariant_loss.3} parent=5 // pred_region
      %s261 = ssub.s32 %s11, 1
      %s262 = smul.u32 4, %s21
      %p263 = scmp.lt.s32.totalorder %s20, 1
      %s264 = scalar_select %p263, %s20, 1
      %p265 = scmp.lt.s32.totalorder %s262, 3
      %s266 = scalar_select %p265, %s262, 3
      %s267 = smul.addr %s264, 4
      %s268 = sadd.s32 %s266, %s267
      %s269 = smul.addr %s268, 8
      %s270 = scalar_lea.vmem %s0, %s269
      %p271 = pneg %p51
      %p272 = pneg %p48
      %s273 = smul.u32 4, %s21
      %p274 = scmp.lt.s32.totalorder %s20, 1
      %s275 = scalar_select %p274, %s20, 1
      %p276 = scmp.lt.s32.totalorder %s273, 3
      %s277 = scalar_select %p276, %s273, 3
      %s278 = smul.addr %s275, 4
      %s279 = sadd.s32 %s277, %s278
      %s280 = smul.addr %s279, 8
      %s281 = scalar_lea.vmem %s1, %s280
      %p282 = pneg %p79
      %p283 = pneg %p76
      %s284 = smul.u32 4, %s21
      %p285 = scmp.lt.s32.totalorder %s20, 1
      %s286 = scalar_select %p285, %s20, 1
      %p287 = scmp.lt.s32.totalorder %s284, 3
      %s288 = scalar_select %p287, %s284, 3
      %s289 = smul.addr %s286, 4
      %s290 = sadd.s32 %s288, %s289
      %s291 = smul.addr %s290, 8
      %s292 = scalar_lea.vmem %s2, %s291
      %p293 = pneg %p107
      %p294 = pneg %p104
      %p295 = scmp.lt.s32.totalorder %s20, 1
      %s296 = scalar_select %p295, %s20, 1
      %s297 = scalar_lea.vmem %s3, %s296
      %p298 = pneg %p133
      %p299 = pneg %p130
      %p300 = scmp.lt.s32.totalorder %s20, 1
      %s301 = scalar_select %p300, %s20, 1
      %s302 = scalar_lea.vmem %s4, %s301
      %p303 = pneg %p159
      %p304 = pneg %p156
      %p305 = pneg %p185
      %p306 = pneg %p182
      %p307 = scmp.lt.s32.totalorder %s20, 1
      %s308 = scalar_select %p307, %s20, 1
      %s309 = smul.addr %s308, 8
      %s310 = scalar_lea.vmem %s5, %s309
      %s311 = smul.u32 4, %s21
      %p312 = scmp.lt.s32.totalorder %s20, 1
      %s313 = scalar_select %p312, %s20, 1
      %p314 = scmp.lt.s32.totalorder %s311, 3
      %s315 = scalar_select %p314, %s311, 3
      %s316 = smul.addr %s313, 4
      %s317 = sadd.s32 %s315, %s316
      %s318 = smul.addr %s317, 8
      %s319 = scalar_lea.vmem %s0, %s318
      %s320 = smul.u32 4, %s21
      %s321 = smul.u32 4, %s21
      %p322 = scmp.lt.s32.totalorder %s20, 1
      %s323 = scalar_select %p322, %s20, 1
      %p324 = scmp.lt.s32.totalorder %s321, 3
      %s325 = scalar_select %p324, %s321, 3
      %s326 = smul.addr %s323, 4
      %s327 = sadd.s32 %s325, %s326
      %s328 = smul.addr %s327, 8
      %s329 = scalar_lea.vmem %s1, %s328
      %s330 = smul.u32 4, %s21
      %s331 = smul.u32 4, %s21
      %p332 = scmp.lt.s32.totalorder %s20, 1
      %s333 = scalar_select %p332, %s20, 1
      %p334 = scmp.lt.s32.totalorder %s331, 3
      %s335 = scalar_select %p334, %s331, 3
      %s336 = smul.addr %s333, 4
      %s337 = sadd.s32 %s335, %s336
      %s338 = smul.addr %s337, 8
      %s339 = scalar_lea.vmem %s2, %s338
      %s340 = smul.u32 4, %s21
      %p341 = scmp.lt.s32.totalorder %s20, 1
      %s342 = scalar_select %p341, %s20, 1
      %s343 = scalar_lea.vmem %s3, %s342
      %p344 = scmp.lt.s32.totalorder %s20, 1
      %s345 = scalar_select %p344, %s20, 1
      %s346 = scalar_lea.vmem %s4, %s345
      %p347 = scmp.lt.s32.totalorder %s20, 1
      %s348 = scalar_select %p347, %s20, 1
      %s349 = smul.addr %s348, 8
      %s350 = scalar_lea.vmem %s5, %s349
      %v351 = vld [vmem:[%s319] sm:$0xff]
      %v352 = vld [vmem:[%s319 + $0x8] sm:$0xff]
      %v353 = vld [vmem:[%s319 + $0x10] sm:$0xff]
      %v354 = vld [vmem:[%s319 + $0x18] sm:$0xff]
      %v355 = vld [vmem:[%s329] sm:$0xff]
      %v356 = vld [vmem:[%s329 + $0x8] sm:$0xff]
      %v357 = vld [vmem:[%s329 + $0x10] sm:$0xff]
      %v358 = vld [vmem:[%s329 + $0x18] sm:$0xff]
      %v359 = vld [vmem:[%s339] sm:$0xff]
      %v360 = vld [vmem:[%s339 + $0x8] sm:$0xff]
      %v361 = vld [vmem:[%s339 + $0x10] sm:$0xff]
      %v362 = vld [vmem:[%s339 + $0x18] sm:$0xff]
      %v363 = vld [vmem:[%s343] sm:$0x1]
      %v364 = vld [vmem:[%s346] sm:$0x1]
      %v366 = vlaneseq
      %v367 = vshrl.u32 %v366, 7
      %v368 = vsub.s32 0, %v367
      %v369 = vrot.slane %v363, %v368
      %370 = vset.pattern.permute.xlu0 0
      %371 = vperm.xlu0 %370, %v369
      %v372 = vpop.permute.xlu0 %371
      %v374 = vmul.f32 %v372, %v351
      %v375 = vmul.f32 %v372, %v352
      %v376 = vmul.f32 %v372, %v353
      %v377 = vmul.f32 %v372, %v354
      %v379 = vlaneseq
      %v380 = vshrl.u32 %v379, 7
      %v381 = vsub.s32 0, %v380
      %v382 = vrot.slane %v364, %v381
      %383 = vset.pattern.permute.xlu0 0
      %384 = vperm.xlu0 %383, %v382
      %v385 = vpop.permute.xlu0 %384
      %v387 = vadd.f32 %v374, %v385
      %v388 = vadd.f32 %v375, %v385
      %v389 = vadd.f32 %v376, %v385
      %v390 = vadd.f32 %v377, %v385
      %v391 = vsub.f32 %v387, %v355
      %v392 = vsub.f32 %v388, %v356
      %v393 = vsub.f32 %v389, %v357
      %v394 = vsub.f32 %v390, %v358
      %v395 = vmul.f32 %v359, %v391
      %v396 = vmul.f32 %v360, %v392
      %v397 = vmul.f32 %v361, %v393
      %v398 = vmul.f32 %v362, %v394
      %v399 = vmul.f32 %v395, %v391
      %v400 = vmul.f32 %v396, %v392
      %v401 = vmul.f32 %v397, %v393
      %v402 = vmul.f32 %v398, %v394
      %vm403 = vcmask 261120
      %v404 = vsel %vm403, %v399, 0.0
      %v405 = vsel %vm403, %v400, 0.0
      %v406 = vadd.f32 %v404, %v405
      %v407 = vsel %vm403, %v401, 0.0
      %v408 = vadd.f32 %v406, %v407
      %v409 = vsel %vm403, %v402, 0.0
      %v410 = vadd.f32 %v408, %v409
      %411 = vadd.xlane.f32.xlu0 %v410
      %v412 = vpop.xlane.xlu0 %411
      %v413 = vrot.slane %v412, 4
      %v414 = vadd.f32 %v412, %v413
      %v415 = vrot.slane %v414, 2
      %v416 = vadd.f32 %v414, %v415
      %v417 = vrot.slane %v416, 1
      %v418 = vadd.f32 %v416, %v417
      %s419 = vtos %v418
      %v420 = vstv %s419
      %v421 = vsel %vm403, %v359, 0.0
      %v422 = vsel %vm403, %v360, 0.0
      %v423 = vadd.f32 %v421, %v422
      %v424 = vsel %vm403, %v361, 0.0
      %v425 = vadd.f32 %v423, %v424
      %v426 = vsel %vm403, %v362, 0.0
      %v427 = vadd.f32 %v425, %v426
      %428 = vadd.xlane.f32.xlu0 %v427
      %v429 = vpop.xlane.xlu0 %428
      %v430 = vrot.slane %v429, 4
      %v431 = vadd.f32 %v429, %v430
      %v432 = vrot.slane %v431, 2
      %v433 = vadd.f32 %v431, %v432
      %v434 = vrot.slane %v433, 1
      %v435 = vadd.f32 %v433, %v434
      %s436 = vtos %v435
      %v437 = vstv %s436
      %v438 = vlaneseq
      %v439 = vshrl.u32 %v438, 7
      %v440 = vadd.s32 %v439, 8
      %v441 = vadd.s32 %v439, 16
      %v442 = vadd.s32 %v439, 24
      %v443 = vlaneseq
      %v444 = vand.u32 %v443, 127
      %449 = vrot.lane.b32.xlu0 %v395, 1
      %v450 = vpop.permute.xlu0 %449
      %451 = vrot.lane.b32.xlu0 %v396, 1
      %v452 = vpop.permute.xlu0 %451
      %453 = vrot.lane.b32.xlu0 %v397, 1
      %v454 = vpop.permute.xlu0 %453
      %455 = vrot.lane.b32.xlu0 %v398, 1
      %v456 = vpop.permute.xlu0 %455
      %v461 = vsub.f32 %v395, %v450
      %v462 = vsub.f32 %v396, %v452
      %v463 = vsub.f32 %v397, %v454
      %v464 = vsub.f32 %v398, %v456
      %v465 = vand.u32 2147483647, %v461
      %v466 = vand.u32 2147483647, %v462
      %v467 = vand.u32 2147483647, %v463
      %v468 = vand.u32 2147483647, %v464
      %473 = vrot.lane.b32.xlu0 %v359, 1
      %v474 = vpop.permute.xlu0 %473
      %475 = vrot.lane.b32.xlu0 %v360, 1
      %v476 = vpop.permute.xlu0 %475
      %477 = vrot.lane.b32.xlu0 %v361, 1
      %v478 = vpop.permute.xlu0 %477
      %479 = vrot.lane.b32.xlu0 %v362, 1
      %v480 = vpop.permute.xlu0 %479
      %v485 = vmul.f32 %v359, %v474
      %v486 = vmul.f32 %v360, %v476
      %v487 = vmul.f32 %v361, %v478
      %v488 = vmul.f32 %v362, %v480
      %v489 = vmul.f32 %v465, %v485
      %v490 = vmul.f32 %v466, %v486
      %v491 = vmul.f32 %v467, %v487
      %v492 = vmul.f32 %v468, %v488
      %497 = vrot.lane.b32.xlu0 %v489, 127
      %v498 = vpop.permute.xlu0 %497
      %499 = vrot.lane.b32.xlu0 %v490, 127
      %v500 = vpop.permute.xlu0 %499
      %501 = vrot.lane.b32.xlu0 %v491, 127
      %v502 = vpop.permute.xlu0 %501
      %503 = vrot.lane.b32.xlu0 %v492, 127
      %v504 = vpop.permute.xlu0 %503
      %vm509 = vcmask 252928
      %v510 = vsel %vm509, %v498, 0.0
      %v511 = vsel %vm509, %v500, 0.0
      %v512 = vadd.f32 %v510, %v511
      %v513 = vsel %vm509, %v502, 0.0
      %v514 = vadd.f32 %v512, %v513
      %v515 = vsel %vm509, %v504, 0.0
      %v516 = vadd.f32 %v514, %v515
      %517 = vadd.xlane.f32.xlu0 %v516
      %v518 = vpop.xlane.xlu0 %517
      %v519 = vrot.slane %v518, 4
      %v520 = vadd.f32 %v518, %v519
      %v521 = vrot.slane %v520, 2
      %v522 = vadd.f32 %v520, %v521
      %v523 = vrot.slane %v522, 1
      %v524 = vadd.f32 %v522, %v523
      %s525 = vtos %v524
      %v526 = vstv %s525
      %v527 = vadd.f32 %v526, 0.0
      %vm528 = vcmask 1040384
      %v529 = vrot.slane %v395, 7
      %v530 = vrot.slane %v396, 7
      %v531 = vsel %vm528, %v529, %v530
      %v532 = vrot.slane %v397, 7
      %v533 = vsel %vm528, %v530, %v532
      %v534 = vrot.slane %v398, 7
      %v535 = vsel %vm528, %v532, %v534
      %v540 = vsub.f32 %v395, %v529
      %v541 = vsub.f32 %v396, %v531
      %v542 = vsub.f32 %v397, %v533
      %v543 = vsub.f32 %v398, %v535
      %v544 = vand.u32 2147483647, %v540
      %v545 = vand.u32 2147483647, %v541
      %v546 = vand.u32 2147483647, %v542
      %v547 = vand.u32 2147483647, %v543
      %v548 = vrot.slane %v359, 7
      %v549 = vrot.slane %v360, 7
      %v550 = vsel %vm528, %v548, %v549
      %v551 = vrot.slane %v361, 7
      %v552 = vsel %vm528, %v549, %v551
      %v553 = vrot.slane %v362, 7
      %v554 = vsel %vm528, %v551, %v553
      %v559 = vmul.f32 %v359, %v548
      %v560 = vmul.f32 %v360, %v550
      %v561 = vmul.f32 %v361, %v552
      %v562 = vmul.f32 %v362, %v554
      %v563 = vmul.f32 %v544, %v559
      %v564 = vmul.f32 %v545, %v560
      %v565 = vmul.f32 %v546, %v561
      %v566 = vmul.f32 %v547, %v562
      %vm571 = vcmask 1046528
      %v572 = vrot.slane %v563, 1
      %v573 = vrot.slane %v564, 1
      %v574 = vsel %vm571, %v572, %v573
      %v575 = vrot.slane %v565, 1
      %v576 = vsel %vm571, %v573, %v575
      %v577 = vrot.slane %v566, 1
      %v578 = vsel %vm571, %v575, %v577
      %v583 = vsel %vm403, %v574, 0.0
      %v584 = vsel %vm403, %v576, 0.0
      %v585 = vadd.f32 %v583, %v584
      %v586 = vsel %vm403, %v578, 0.0
      %v587 = vadd.f32 %v585, %v586
      %vm588 = vcmask 260096
      %v589 = vsel %vm588, %v577, 0.0
      %v590 = vadd.f32 %v587, %v589
      %591 = vadd.xlane.f32.xlu0 %v590
      %v592 = vpop.xlane.xlu0 %591
      %v593 = vrot.slane %v592, 4
      %v594 = vadd.f32 %v592, %v593
      %v595 = vrot.slane %v594, 2
      %v596 = vadd.f32 %v594, %v595
      %v597 = vrot.slane %v596, 1
      %v598 = vadd.f32 %v596, %v597
      %s599 = vtos %v598
      %v600 = vstv %s599
      %v601 = vadd.f32 %v527, %v600
      %vm602 = vcmp.lt.s32.totalorder %v439, 0
      %v603 = vsub.s32 0, %v439
      %v604 = vsel %vm602, %v603, %v439
      %v605 = vshrl.u32 %v604, 1
      %v606 = vand.u32 %v604, 1
      %v607 = vsub.s32 0, %v606
      %v608 = vsel %vm602, %v607, %v606
      %vm609 = vcmp.lt.s32.totalorder %v440, 0
      %v610 = vsub.s32 0, %v440
      %v611 = vsel %vm609, %v610, %v440
      %v612 = vshrl.u32 %v611, 1
      %v613 = vand.u32 %v611, 1
      %v614 = vsub.s32 0, %v613
      %v615 = vsel %vm609, %v614, %v613
      %vm616 = vcmp.lt.s32.totalorder %v441, 0
      %v617 = vsub.s32 0, %v441
      %v618 = vsel %vm616, %v617, %v441
      %v619 = vshrl.u32 %v618, 1
      %v620 = vand.u32 %v618, 1
      %v621 = vsub.s32 0, %v620
      %v622 = vsel %vm616, %v621, %v620
      %vm623 = vcmp.lt.s32.totalorder %v442, 0
      %v624 = vsub.s32 0, %v442
      %v625 = vsel %vm623, %v624, %v442
      %v626 = vshrl.u32 %v625, 1
      %v627 = vand.u32 %v625, 1
      %v628 = vsub.s32 0, %v627
      %v629 = vsel %vm623, %v628, %v627
      %vm630 = vcmp.ne.s32.totalorder %v608, 0
      %vm631 = vcmp.ne.s32.totalorder %v615, 0
      %vm632 = vcmp.ne.s32.totalorder %v622, 0
      %vm633 = vcmp.ne.s32.totalorder %v629, 0
      %vm634 = vcmp.lt.s32.totalorder %v608, 0
      %vm635 = vcmp.lt.s32.totalorder %v615, 0
      %vm636 = vcmp.lt.s32.totalorder %v622, 0
      %vm637 = vcmp.lt.s32.totalorder %v629, 0
      %vm638 = vmand %vm634, %vm630
      %vm639 = vmand %vm635, %vm631
      %vm640 = vmand %vm636, %vm632
      %vm641 = vmand %vm637, %vm633
      %v642 = vadd.s32 %v608, 2
      %v643 = vadd.s32 %v615, 2
      %v644 = vadd.s32 %v622, 2
      %v645 = vadd.s32 %v629, 2
      %v646 = vsel %vm638, %v642, %v608
      %v647 = vsel %vm639, %v643, %v615
      %v648 = vsel %vm640, %v644, %v622
      %v649 = vsel %vm641, %v645, %v629
      %vm650 = vcmp.eq.s32.totalorder %v646, 0
      %vm651 = vcmp.eq.s32.totalorder %v647, 0
      %vm652 = vcmp.eq.s32.totalorder %v648, 0
      %vm653 = vcmp.eq.s32.totalorder %v649, 0
      %vm654 = vcmp.lt.s32.totalorder %v444, 0
      %v655 = vsub.s32 0, %v444
      %v656 = vsel %vm654, %v655, %v444
      %v657 = vshrl.u32 %v656, 1
      %v658 = vand.u32 %v656, 1
      %v659 = vsub.s32 0, %v658
      %v660 = vsel %vm654, %v659, %v658
      %vm661 = vcmp.ne.s32.totalorder %v660, 0
      %vm662 = vcmp.lt.s32.totalorder %v660, 0
      %vm663 = vmand %vm662, %vm661
      %v664 = vadd.s32 %v660, 2
      %v665 = vsel %vm663, %v664, %v660
      %vm666 = vcmp.eq.s32.totalorder %v665, 0
      %vm667 = vmand %vm650, %vm666
      %vm668 = vmand %vm651, %vm666
      %vm669 = vmand %vm652, %vm666
      %vm670 = vmand %vm653, %vm666
      %v671 = vsel %vm667, %v359, 0.0
      %v672 = vsel %vm668, %v360, 0.0
      %v673 = vsel %vm669, %v361, 0.0
      %v674 = vsel %vm670, %v362, 0.0
      %v675 = vsel %vm403, %v671, 0.0
      %v676 = vsel %vm403, %v672, 0.0
      %v677 = vadd.f32 %v675, %v676
      %v678 = vsel %vm403, %v673, 0.0
      %v679 = vadd.f32 %v677, %v678
      %v680 = vsel %vm403, %v674, 0.0
      %v681 = vadd.f32 %v679, %v680
      %682 = vadd.xlane.f32.xlu0 %v681
      %v683 = vpop.xlane.xlu0 %682
      %v684 = vrot.slane %v683, 4
      %v685 = vadd.f32 %v683, %v684
      %v686 = vrot.slane %v685, 2
      %v687 = vadd.f32 %v685, %v686
      %v688 = vrot.slane %v687, 1
      %v689 = vadd.f32 %v687, %v688
      %s690 = vtos %v689
      %v691 = vstv %s690
      %692 = vrot.lane.b32.xlu0 %v395, 2
      %v693 = vpop.permute.xlu0 %692
      %694 = vrot.lane.b32.xlu0 %v396, 2
      %v695 = vpop.permute.xlu0 %694
      %696 = vrot.lane.b32.xlu0 %v397, 2
      %v697 = vpop.permute.xlu0 %696
      %698 = vrot.lane.b32.xlu0 %v398, 2
      %v699 = vpop.permute.xlu0 %698
      %v704 = vsub.f32 %v395, %v693
      %v705 = vsub.f32 %v396, %v695
      %v706 = vsub.f32 %v397, %v697
      %v707 = vsub.f32 %v398, %v699
      %v708 = vand.u32 2147483647, %v704
      %v709 = vand.u32 2147483647, %v705
      %v710 = vand.u32 2147483647, %v706
      %v711 = vand.u32 2147483647, %v707
      %712 = vrot.lane.b32.xlu0 %v359, 2
      %v713 = vpop.permute.xlu0 %712
      %714 = vrot.lane.b32.xlu0 %v360, 2
      %v715 = vpop.permute.xlu0 %714
      %716 = vrot.lane.b32.xlu0 %v361, 2
      %v717 = vpop.permute.xlu0 %716
      %718 = vrot.lane.b32.xlu0 %v362, 2
      %v719 = vpop.permute.xlu0 %718
      %v724 = vmul.f32 %v359, %v713
      %v725 = vmul.f32 %v360, %v715
      %v726 = vmul.f32 %v361, %v717
      %v727 = vmul.f32 %v362, %v719
      %v728 = vmul.f32 %v708, %v724
      %v729 = vmul.f32 %v709, %v725
      %v730 = vmul.f32 %v710, %v726
      %v731 = vmul.f32 %v711, %v727
      %736 = vrot.lane.b32.xlu0 %v728, 126
      %v737 = vpop.permute.xlu0 %736
      %738 = vrot.lane.b32.xlu0 %v729, 126
      %v739 = vpop.permute.xlu0 %738
      %740 = vrot.lane.b32.xlu0 %v730, 126
      %v741 = vpop.permute.xlu0 %740
      %742 = vrot.lane.b32.xlu0 %v731, 126
      %v743 = vpop.permute.xlu0 %742
      %v748 = vsel %vm667, %v737, 0.0
      %v749 = vsel %vm668, %v739, 0.0
      %v750 = vsel %vm669, %v741, 0.0
      %v751 = vsel %vm670, %v743, 0.0
      %vm752 = vcmask 244736
      %v753 = vsel %vm752, %v748, 0.0
      %v754 = vsel %vm752, %v749, 0.0
      %v755 = vadd.f32 %v753, %v754
      %v756 = vsel %vm752, %v750, 0.0
      %v757 = vadd.f32 %v755, %v756
      %v758 = vsel %vm752, %v751, 0.0
      %v759 = vadd.f32 %v757, %v758
      %760 = vadd.xlane.f32.xlu0 %v759
      %v761 = vpop.xlane.xlu0 %760
      %v762 = vrot.slane %v761, 4
      %v763 = vadd.f32 %v761, %v762
      %v764 = vrot.slane %v763, 2
      %v765 = vadd.f32 %v763, %v764
      %v766 = vrot.slane %v765, 1
      %v767 = vadd.f32 %v765, %v766
      %s768 = vtos %v767
      %v769 = vstv %s768
      %v770 = vadd.f32 %v769, 0.0
      %vm771 = vcmask 1041408
      %v772 = vrot.slane %v395, 6
      %v773 = vrot.slane %v396, 6
      %v774 = vsel %vm771, %v772, %v773
      %v775 = vrot.slane %v397, 6
      %v776 = vsel %vm771, %v773, %v775
      %v777 = vrot.slane %v398, 6
      %v778 = vsel %vm771, %v775, %v777
      %v783 = vsub.f32 %v395, %v772
      %v784 = vsub.f32 %v396, %v774
      %v785 = vsub.f32 %v397, %v776
      %v786 = vsub.f32 %v398, %v778
      %v787 = vand.u32 2147483647, %v783
      %v788 = vand.u32 2147483647, %v784
      %v789 = vand.u32 2147483647, %v785
      %v790 = vand.u32 2147483647, %v786
      %v791 = vrot.slane %v359, 6
      %v792 = vrot.slane %v360, 6
      %v793 = vsel %vm771, %v791, %v792
      %v794 = vrot.slane %v361, 6
      %v795 = vsel %vm771, %v792, %v794
      %v796 = vrot.slane %v362, 6
      %v797 = vsel %vm771, %v794, %v796
      %v802 = vmul.f32 %v359, %v791
      %v803 = vmul.f32 %v360, %v793
      %v804 = vmul.f32 %v361, %v795
      %v805 = vmul.f32 %v362, %v797
      %v806 = vmul.f32 %v787, %v802
      %v807 = vmul.f32 %v788, %v803
      %v808 = vmul.f32 %v789, %v804
      %v809 = vmul.f32 %v790, %v805
      %vm814 = vcmask 1045504
      %v815 = vrot.slane %v806, 2
      %v816 = vrot.slane %v807, 2
      %v817 = vsel %vm814, %v815, %v816
      %v818 = vrot.slane %v808, 2
      %v819 = vsel %vm814, %v816, %v818
      %v820 = vrot.slane %v809, 2
      %v821 = vsel %vm814, %v818, %v820
      %v826 = vsel %vm667, %v817, 0.0
      %v827 = vsel %vm668, %v819, 0.0
      %v828 = vsel %vm669, %v821, 0.0
      %v829 = vsel %vm670, %v820, 0.0
      %v830 = vsel %vm403, %v826, 0.0
      %v831 = vsel %vm403, %v827, 0.0
      %v832 = vadd.f32 %v830, %v831
      %v833 = vsel %vm403, %v828, 0.0
      %v834 = vadd.f32 %v832, %v833
      %vm835 = vcmask 259072
      %v836 = vsel %vm835, %v829, 0.0
      %v837 = vadd.f32 %v834, %v836
      %838 = vadd.xlane.f32.xlu0 %v837
      %v839 = vpop.xlane.xlu0 %838
      %v840 = vrot.slane %v839, 4
      %v841 = vadd.f32 %v839, %v840
      %v842 = vrot.slane %v841, 2
      %v843 = vadd.f32 %v841, %v842
      %v844 = vrot.slane %v843, 1
      %v845 = vadd.f32 %v843, %v844
      %s846 = vtos %v845
      %v847 = vstv %s846
      %v848 = vadd.f32 %v770, %v847
      %vm849 = vcmp.lt.s32.totalorder %v439, 0
      %v850 = vsub.s32 0, %v439
      %v851 = vsel %vm849, %v850, %v439
      %v852 = vshrl.u32 %v851, 2
      %v853 = vand.u32 %v851, 3
      %v854 = vsub.s32 0, %v853
      %v855 = vsel %vm849, %v854, %v853
      %vm856 = vcmp.lt.s32.totalorder %v440, 0
      %v857 = vsub.s32 0, %v440
      %v858 = vsel %vm856, %v857, %v440
      %v859 = vshrl.u32 %v858, 2
      %v860 = vand.u32 %v858, 3
      %v861 = vsub.s32 0, %v860
      %v862 = vsel %vm856, %v861, %v860
      %vm863 = vcmp.lt.s32.totalorder %v441, 0
      %v864 = vsub.s32 0, %v441
      %v865 = vsel %vm863, %v864, %v441
      %v866 = vshrl.u32 %v865, 2
      %v867 = vand.u32 %v865, 3
      %v868 = vsub.s32 0, %v867
      %v869 = vsel %vm863, %v868, %v867
      %vm870 = vcmp.lt.s32.totalorder %v442, 0
      %v871 = vsub.s32 0, %v442
      %v872 = vsel %vm870, %v871, %v442
      %v873 = vshrl.u32 %v872, 2
      %v874 = vand.u32 %v872, 3
      %v875 = vsub.s32 0, %v874
      %v876 = vsel %vm870, %v875, %v874
      %vm877 = vcmp.ne.s32.totalorder %v855, 0
      %vm878 = vcmp.ne.s32.totalorder %v862, 0
      %vm879 = vcmp.ne.s32.totalorder %v869, 0
      %vm880 = vcmp.ne.s32.totalorder %v876, 0
      %vm881 = vcmp.lt.s32.totalorder %v855, 0
      %vm882 = vcmp.lt.s32.totalorder %v862, 0
      %vm883 = vcmp.lt.s32.totalorder %v869, 0
      %vm884 = vcmp.lt.s32.totalorder %v876, 0
      %vm885 = vmand %vm881, %vm877
      %vm886 = vmand %vm882, %vm878
      %vm887 = vmand %vm883, %vm879
      %vm888 = vmand %vm884, %vm880
      %v889 = vadd.s32 %v855, 4
      %v890 = vadd.s32 %v862, 4
      %v891 = vadd.s32 %v869, 4
      %v892 = vadd.s32 %v876, 4
      %v893 = vsel %vm885, %v889, %v855
      %v894 = vsel %vm886, %v890, %v862
      %v895 = vsel %vm887, %v891, %v869
      %v896 = vsel %vm888, %v892, %v876
      %vm897 = vcmp.eq.s32.totalorder %v893, 0
      %vm898 = vcmp.eq.s32.totalorder %v894, 0
      %vm899 = vcmp.eq.s32.totalorder %v895, 0
      %vm900 = vcmp.eq.s32.totalorder %v896, 0
      %vm901 = vcmp.lt.s32.totalorder %v444, 0
      %v902 = vsub.s32 0, %v444
      %v903 = vsel %vm901, %v902, %v444
      %v904 = vshrl.u32 %v903, 2
      %v905 = vand.u32 %v903, 3
      %v906 = vsub.s32 0, %v905
      %v907 = vsel %vm901, %v906, %v905
      %vm908 = vcmp.ne.s32.totalorder %v907, 0
      %vm909 = vcmp.lt.s32.totalorder %v907, 0
      %vm910 = vmand %vm909, %vm908
      %v911 = vadd.s32 %v907, 4
      %v912 = vsel %vm910, %v911, %v907
      %vm913 = vcmp.eq.s32.totalorder %v912, 0
      %vm914 = vmand %vm897, %vm913
      %vm915 = vmand %vm898, %vm913
      %vm916 = vmand %vm899, %vm913
      %vm917 = vmand %vm900, %vm913
      %v918 = vsel %vm914, %v359, 0.0
      %v919 = vsel %vm915, %v360, 0.0
      %v920 = vsel %vm916, %v361, 0.0
      %v921 = vsel %vm917, %v362, 0.0
      %v922 = vsel %vm403, %v918, 0.0
      %v923 = vsel %vm403, %v919, 0.0
      %v924 = vadd.f32 %v922, %v923
      %v925 = vsel %vm403, %v920, 0.0
      %v926 = vadd.f32 %v924, %v925
      %v927 = vsel %vm403, %v921, 0.0
      %v928 = vadd.f32 %v926, %v927
      %929 = vadd.xlane.f32.xlu0 %v928
      %v930 = vpop.xlane.xlu0 %929
      %v931 = vrot.slane %v930, 4
      %v932 = vadd.f32 %v930, %v931
      %v933 = vrot.slane %v932, 2
      %v934 = vadd.f32 %v932, %v933
      %v935 = vrot.slane %v934, 1
      %v936 = vadd.f32 %v934, %v935
      %s937 = vtos %v936
      %v938 = vstv %s937
      %939 = vrot.lane.b32.xlu0 %v395, 4
      %v940 = vpop.permute.xlu0 %939
      %941 = vrot.lane.b32.xlu0 %v396, 4
      %v942 = vpop.permute.xlu0 %941
      %943 = vrot.lane.b32.xlu0 %v397, 4
      %v944 = vpop.permute.xlu0 %943
      %945 = vrot.lane.b32.xlu0 %v398, 4
      %v946 = vpop.permute.xlu0 %945
      %v951 = vsub.f32 %v395, %v940
      %v952 = vsub.f32 %v396, %v942
      %v953 = vsub.f32 %v397, %v944
      %v954 = vsub.f32 %v398, %v946
      %v955 = vand.u32 2147483647, %v951
      %v956 = vand.u32 2147483647, %v952
      %v957 = vand.u32 2147483647, %v953
      %v958 = vand.u32 2147483647, %v954
      %959 = vrot.lane.b32.xlu0 %v359, 4
      %v960 = vpop.permute.xlu0 %959
      %961 = vrot.lane.b32.xlu0 %v360, 4
      %v962 = vpop.permute.xlu0 %961
      %963 = vrot.lane.b32.xlu0 %v361, 4
      %v964 = vpop.permute.xlu0 %963
      %965 = vrot.lane.b32.xlu0 %v362, 4
      %v966 = vpop.permute.xlu0 %965
      %v971 = vmul.f32 %v359, %v960
      %v972 = vmul.f32 %v360, %v962
      %v973 = vmul.f32 %v361, %v964
      %v974 = vmul.f32 %v362, %v966
      %v975 = vmul.f32 %v955, %v971
      %v976 = vmul.f32 %v956, %v972
      %v977 = vmul.f32 %v957, %v973
      %v978 = vmul.f32 %v958, %v974
      %983 = vrot.lane.b32.xlu0 %v975, 124
      %v984 = vpop.permute.xlu0 %983
      %985 = vrot.lane.b32.xlu0 %v976, 124
      %v986 = vpop.permute.xlu0 %985
      %987 = vrot.lane.b32.xlu0 %v977, 124
      %v988 = vpop.permute.xlu0 %987
      %989 = vrot.lane.b32.xlu0 %v978, 124
      %v990 = vpop.permute.xlu0 %989
      %v995 = vsel %vm914, %v984, 0.0
      %v996 = vsel %vm915, %v986, 0.0
      %v997 = vsel %vm916, %v988, 0.0
      %v998 = vsel %vm917, %v990, 0.0
      %vm999 = vcmask 228352
      %v1000 = vsel %vm999, %v995, 0.0
      %v1001 = vsel %vm999, %v996, 0.0
      %v1002 = vadd.f32 %v1000, %v1001
      %v1003 = vsel %vm999, %v997, 0.0
      %v1004 = vadd.f32 %v1002, %v1003
      %v1005 = vsel %vm999, %v998, 0.0
      %v1006 = vadd.f32 %v1004, %v1005
      %1007 = vadd.xlane.f32.xlu0 %v1006
      %v1008 = vpop.xlane.xlu0 %1007
      %v1009 = vrot.slane %v1008, 4
      %v1010 = vadd.f32 %v1008, %v1009
      %v1011 = vrot.slane %v1010, 2
      %v1012 = vadd.f32 %v1010, %v1011
      %v1013 = vrot.slane %v1012, 1
      %v1014 = vadd.f32 %v1012, %v1013
      %s1015 = vtos %v1014
      %v1016 = vstv %s1015
      %v1017 = vadd.f32 %v1016, 0.0
      %vm1018 = vcmask 1043456
      %v1019 = vrot.slane %v395, 4
      %v1020 = vrot.slane %v396, 4
      %v1021 = vsel %vm1018, %v1019, %v1020
      %v1022 = vrot.slane %v397, 4
      %v1023 = vsel %vm1018, %v1020, %v1022
      %v1024 = vrot.slane %v398, 4
      %v1025 = vsel %vm1018, %v1022, %v1024
      %v1030 = vsub.f32 %v395, %v1019
      %v1031 = vsub.f32 %v396, %v1021
      %v1032 = vsub.f32 %v397, %v1023
      %v1033 = vsub.f32 %v398, %v1025
      %v1034 = vand.u32 2147483647, %v1030
      %v1035 = vand.u32 2147483647, %v1031
      %v1036 = vand.u32 2147483647, %v1032
      %v1037 = vand.u32 2147483647, %v1033
      %v1038 = vrot.slane %v359, 4
      %v1039 = vrot.slane %v360, 4
      %v1040 = vsel %vm1018, %v1038, %v1039
      %v1041 = vrot.slane %v361, 4
      %v1042 = vsel %vm1018, %v1039, %v1041
      %v1043 = vrot.slane %v362, 4
      %v1044 = vsel %vm1018, %v1041, %v1043
      %v1049 = vmul.f32 %v359, %v1038
      %v1050 = vmul.f32 %v360, %v1040
      %v1051 = vmul.f32 %v361, %v1042
      %v1052 = vmul.f32 %v362, %v1044
      %v1053 = vmul.f32 %v1034, %v1049
      %v1054 = vmul.f32 %v1035, %v1050
      %v1055 = vmul.f32 %v1036, %v1051
      %v1056 = vmul.f32 %v1037, %v1052
      %v1061 = vrot.slane %v1053, 4
      %v1062 = vrot.slane %v1054, 4
      %v1063 = vsel %vm1018, %v1061, %v1062
      %v1064 = vrot.slane %v1055, 4
      %v1065 = vsel %vm1018, %v1062, %v1064
      %v1066 = vrot.slane %v1056, 4
      %v1067 = vsel %vm1018, %v1064, %v1066
      %v1072 = vsel %vm914, %v1063, 0.0
      %v1073 = vsel %vm915, %v1065, 0.0
      %v1074 = vsel %vm916, %v1067, 0.0
      %v1075 = vsel %vm917, %v1066, 0.0
      %v1076 = vsel %vm403, %v1072, 0.0
      %v1077 = vsel %vm403, %v1073, 0.0
      %v1078 = vadd.f32 %v1076, %v1077
      %v1079 = vsel %vm403, %v1074, 0.0
      %v1080 = vadd.f32 %v1078, %v1079
      %vm1081 = vcmask 257024
      %v1082 = vsel %vm1081, %v1075, 0.0
      %v1083 = vadd.f32 %v1080, %v1082
      %1084 = vadd.xlane.f32.xlu0 %v1083
      %v1085 = vpop.xlane.xlu0 %1084
      %v1086 = vrot.slane %v1085, 4
      %v1087 = vadd.f32 %v1085, %v1086
      %v1088 = vrot.slane %v1087, 2
      %v1089 = vadd.f32 %v1087, %v1088
      %v1090 = vrot.slane %v1089, 1
      %v1091 = vadd.f32 %v1089, %v1090
      %s1092 = vtos %v1091
      %v1093 = vstv %s1092
      %v1094 = vadd.f32 %v1017, %v1093
      %vm1095 = vcmp.lt.s32.totalorder %v439, 0
      %v1096 = vsub.s32 0, %v439
      %v1097 = vsel %vm1095, %v1096, %v439
      %v1098 = vshrl.u32 %v1097, 3
      %v1099 = vand.u32 %v1097, 7
      %v1100 = vsub.s32 0, %v1099
      %v1101 = vsel %vm1095, %v1100, %v1099
      %vm1102 = vcmp.lt.s32.totalorder %v440, 0
      %v1103 = vsub.s32 0, %v440
      %v1104 = vsel %vm1102, %v1103, %v440
      %v1105 = vshrl.u32 %v1104, 3
      %v1106 = vand.u32 %v1104, 7
      %v1107 = vsub.s32 0, %v1106
      %v1108 = vsel %vm1102, %v1107, %v1106
      %vm1109 = vcmp.lt.s32.totalorder %v441, 0
      %v1110 = vsub.s32 0, %v441
      %v1111 = vsel %vm1109, %v1110, %v441
      %v1112 = vshrl.u32 %v1111, 3
      %v1113 = vand.u32 %v1111, 7
      %v1114 = vsub.s32 0, %v1113
      %v1115 = vsel %vm1109, %v1114, %v1113
      %vm1116 = vcmp.lt.s32.totalorder %v442, 0
      %v1117 = vsub.s32 0, %v442
      %v1118 = vsel %vm1116, %v1117, %v442
      %v1119 = vshrl.u32 %v1118, 3
      %v1120 = vand.u32 %v1118, 7
      %v1121 = vsub.s32 0, %v1120
      %v1122 = vsel %vm1116, %v1121, %v1120
      %vm1123 = vcmp.ne.s32.totalorder %v1101, 0
      %vm1124 = vcmp.ne.s32.totalorder %v1108, 0
      %vm1125 = vcmp.ne.s32.totalorder %v1115, 0
      %vm1126 = vcmp.ne.s32.totalorder %v1122, 0
      %vm1127 = vcmp.lt.s32.totalorder %v1101, 0
      %vm1128 = vcmp.lt.s32.totalorder %v1108, 0
      %vm1129 = vcmp.lt.s32.totalorder %v1115, 0
      %vm1130 = vcmp.lt.s32.totalorder %v1122, 0
      %vm1131 = vmand %vm1127, %vm1123
      %vm1132 = vmand %vm1128, %vm1124
      %vm1133 = vmand %vm1129, %vm1125
      %vm1134 = vmand %vm1130, %vm1126
      %v1135 = vadd.s32 %v1101, 8
      %v1136 = vadd.s32 %v1108, 8
      %v1137 = vadd.s32 %v1115, 8
      %v1138 = vadd.s32 %v1122, 8
      %v1139 = vsel %vm1131, %v1135, %v1101
      %v1140 = vsel %vm1132, %v1136, %v1108
      %v1141 = vsel %vm1133, %v1137, %v1115
      %v1142 = vsel %vm1134, %v1138, %v1122
      %vm1143 = vcmp.eq.s32.totalorder %v1139, 0
      %vm1144 = vcmp.eq.s32.totalorder %v1140, 0
      %vm1145 = vcmp.eq.s32.totalorder %v1141, 0
      %vm1146 = vcmp.eq.s32.totalorder %v1142, 0
      %vm1147 = vcmp.lt.s32.totalorder %v444, 0
      %v1148 = vsub.s32 0, %v444
      %v1149 = vsel %vm1147, %v1148, %v444
      %v1150 = vshrl.u32 %v1149, 3
      %v1151 = vand.u32 %v1149, 7
      %v1152 = vsub.s32 0, %v1151
      %v1153 = vsel %vm1147, %v1152, %v1151
      %vm1154 = vcmp.ne.s32.totalorder %v1153, 0
      %vm1155 = vcmp.lt.s32.totalorder %v1153, 0
      %vm1156 = vmand %vm1155, %vm1154
      %v1157 = vadd.s32 %v1153, 8
      %v1158 = vsel %vm1156, %v1157, %v1153
      %vm1159 = vcmp.eq.s32.totalorder %v1158, 0
      %vm1160 = vmand %vm1143, %vm1159
      %vm1161 = vmand %vm1144, %vm1159
      %vm1162 = vmand %vm1145, %vm1159
      %vm1163 = vmand %vm1146, %vm1159
      %v1164 = vsel %vm1160, %v359, 0.0
      %v1165 = vsel %vm1161, %v360, 0.0
      %v1166 = vsel %vm1162, %v361, 0.0
      %v1167 = vsel %vm1163, %v362, 0.0
      %v1168 = vsel %vm403, %v1164, 0.0
      %v1169 = vsel %vm403, %v1165, 0.0
      %v1170 = vadd.f32 %v1168, %v1169
      %v1171 = vsel %vm403, %v1166, 0.0
      %v1172 = vadd.f32 %v1170, %v1171
      %v1173 = vsel %vm403, %v1167, 0.0
      %v1174 = vadd.f32 %v1172, %v1173
      %1175 = vadd.xlane.f32.xlu0 %v1174
      %v1176 = vpop.xlane.xlu0 %1175
      %v1177 = vrot.slane %v1176, 4
      %v1178 = vadd.f32 %v1176, %v1177
      %v1179 = vrot.slane %v1178, 2
      %v1180 = vadd.f32 %v1178, %v1179
      %v1181 = vrot.slane %v1180, 1
      %v1182 = vadd.f32 %v1180, %v1181
      %s1183 = vtos %v1182
      %v1184 = vstv %s1183
      %1185 = vrot.lane.b32.xlu0 %v395, 8
      %v1186 = vpop.permute.xlu0 %1185
      %1187 = vrot.lane.b32.xlu0 %v396, 8
      %v1188 = vpop.permute.xlu0 %1187
      %1189 = vrot.lane.b32.xlu0 %v397, 8
      %v1190 = vpop.permute.xlu0 %1189
      %1191 = vrot.lane.b32.xlu0 %v398, 8
      %v1192 = vpop.permute.xlu0 %1191
      %v1197 = vsub.f32 %v395, %v1186
      %v1198 = vsub.f32 %v396, %v1188
      %v1199 = vsub.f32 %v397, %v1190
      %v1200 = vsub.f32 %v398, %v1192
      %v1201 = vand.u32 2147483647, %v1197
      %v1202 = vand.u32 2147483647, %v1198
      %v1203 = vand.u32 2147483647, %v1199
      %v1204 = vand.u32 2147483647, %v1200
      %1205 = vrot.lane.b32.xlu0 %v359, 8
      %v1206 = vpop.permute.xlu0 %1205
      %1207 = vrot.lane.b32.xlu0 %v360, 8
      %v1208 = vpop.permute.xlu0 %1207
      %1209 = vrot.lane.b32.xlu0 %v361, 8
      %v1210 = vpop.permute.xlu0 %1209
      %1211 = vrot.lane.b32.xlu0 %v362, 8
      %v1212 = vpop.permute.xlu0 %1211
      %v1217 = vmul.f32 %v359, %v1206
      %v1218 = vmul.f32 %v360, %v1208
      %v1219 = vmul.f32 %v361, %v1210
      %v1220 = vmul.f32 %v362, %v1212
      %v1221 = vmul.f32 %v1201, %v1217
      %v1222 = vmul.f32 %v1202, %v1218
      %v1223 = vmul.f32 %v1203, %v1219
      %v1224 = vmul.f32 %v1204, %v1220
      %1229 = vrot.lane.b32.xlu0 %v1221, 120
      %v1230 = vpop.permute.xlu0 %1229
      %1231 = vrot.lane.b32.xlu0 %v1222, 120
      %v1232 = vpop.permute.xlu0 %1231
      %1233 = vrot.lane.b32.xlu0 %v1223, 120
      %v1234 = vpop.permute.xlu0 %1233
      %1235 = vrot.lane.b32.xlu0 %v1224, 120
      %v1236 = vpop.permute.xlu0 %1235
      %v1241 = vsel %vm1160, %v1230, 0.0
      %v1242 = vsel %vm1161, %v1232, 0.0
      %v1243 = vsel %vm1162, %v1234, 0.0
      %v1244 = vsel %vm1163, %v1236, 0.0
      %vm1245 = vcmask 195584
      %v1246 = vsel %vm1245, %v1241, 0.0
      %v1247 = vsel %vm1245, %v1242, 0.0
      %v1248 = vadd.f32 %v1246, %v1247
      %v1249 = vsel %vm1245, %v1243, 0.0
      %v1250 = vadd.f32 %v1248, %v1249
      %v1251 = vsel %vm1245, %v1244, 0.0
      %v1252 = vadd.f32 %v1250, %v1251
      %1253 = vadd.xlane.f32.xlu0 %v1252
      %v1254 = vpop.xlane.xlu0 %1253
      %v1255 = vrot.slane %v1254, 4
      %v1256 = vadd.f32 %v1254, %v1255
      %v1257 = vrot.slane %v1256, 2
      %v1258 = vadd.f32 %v1256, %v1257
      %v1259 = vrot.slane %v1258, 1
      %v1260 = vadd.f32 %v1258, %v1259
      %s1261 = vtos %v1260
      %v1262 = vstv %s1261
      %v1263 = vadd.f32 %v1262, 0.0
      %v1264 = vsub.f32 %v396, %v395
      %v1265 = vsub.f32 %v397, %v396
      %v1266 = vsub.f32 %v398, %v397
      %v1267 = vand.u32 2147483647, %v1264
      %v1268 = vand.u32 2147483647, %v1265
      %v1269 = vand.u32 2147483647, %v1266
      %v1270 = vmul.f32 %v360, %v359
      %v1271 = vmul.f32 %v361, %v360
      %v1272 = vmul.f32 %v362, %v361
      %v1273 = vmul.f32 %v1267, %v1270
      %v1274 = vmul.f32 %v1268, %v1271
      %v1275 = vmul.f32 %v1269, %v1272
      %v1276 = vsel %vm1160, %v1273, 0.0
      %v1277 = vsel %vm1161, %v1274, 0.0
      %v1278 = vsel %vm1162, %v1275, 0.0
      %v1279 = vsel %vm403, %v1276, 0.0
      %v1280 = vsel %vm403, %v1277, 0.0
      %v1281 = vadd.f32 %v1279, %v1280
      %v1282 = vsel %vm403, %v1278, 0.0
      %v1283 = vadd.f32 %v1281, %v1282
      %1284 = vadd.xlane.f32.xlu0 %v1283
      %v1285 = vpop.xlane.xlu0 %1284
      %v1286 = vrot.slane %v1285, 4
      %v1287 = vadd.f32 %v1285, %v1286
      %v1288 = vrot.slane %v1287, 2
      %v1289 = vadd.f32 %v1287, %v1288
      %v1290 = vrot.slane %v1289, 1
      %v1291 = vadd.f32 %v1289, %v1290
      %s1292 = vtos %v1291
      %v1293 = vstv %s1292
      %v1294 = vadd.f32 %v1263, %v1293
      %vm1295 = vcmask 7168
      %v1296 = vsel %vm1295, %v420, %v437
      %vm1297 = vcmask 15360
      %v1298 = vsel %vm1297, %v1296, %v601
      %vm1299 = vcmask 23552
      %v1300 = vsel %vm1299, %v1298, %v848
      %vm1301 = vcmask 31744
      %v1302 = vsel %vm1301, %v1300, %v1094
      %vm1303 = vcmask 39936
      %v1304 = vsel %vm1303, %v1302, %v1294
      %vm1305 = vcmask 48128
      %v1306 = vsel %vm1305, %v1304, %v437
      %vm1307 = vcmask 56320
      %v1308 = vsel %vm1307, %v1306, %v691
      %vm1309 = vcmask 64512
      %v1310 = vsel %vm1309, %v1308, %v938
      %vm1311 = vcmask 72704
      %v1312 = vsel %vm1311, %v1310, %v1184
      %p1313 = scmp.eq.s32.totalorder %s21, 0
      // Predicated region
      $region41: #{scale_and_shift_invariant_loss.3} parent=39 // pred_check
        %p1314 = pneg %p1313
      $region42: #{scale_and_shift_invariant_loss.3} parent=39 // pred_check_branch
        %1316 = sbr.rel (%p1314) target = $region44
      $region43: #{scale_and_shift_invariant_loss.3} parent=39 // pred_region
        %1317 = vst [vmem:[%s350] sm:$0xff] 0.0
      $region44: #{scale_and_shift_invariant_loss.3} parent=39 // pred_fallthru
        _
      %v1318 = vld [vmem:[%s350] sm:$0x1]
      %v1319 = vadd.f32 %v1318, %v1312
      %vm1320 = vcmask 73728
      %1321 = vst.msk [vmem:[%s350] sm:$0x1] %vm1320, %v1319
      %p1322 = scmp.lt.s32.totalorder %s20, 1
      %s1323 = scalar_select %p1322, %s20, 1
      %s1324 = smul.addr %s1323, 8
      %s1325 = scalar_lea.vmem %s5, %s1324
      // Predicated region
      $region45: #{scale_and_shift_invariant_loss.3} parent=39 // pred_check
        %p1326 = pneg %p182
      $region46: #{scale_and_shift_invariant_loss.3} parent=39 // pred_check_branch
        %1328 = sbr.rel (%p1326) target = $region48
      $region47: #{scale_and_shift_invariant_loss.3} parent=39 // pred_region
        _
      $region48: #{scale_and_shift_invariant_loss.3} parent=39 // pred_fallthru
        _
    $region40: #{scale_and_shift_invariant_loss.3} parent=5 // pred_fallthru
      _
    %p1329 = scmp.le.s32.totalorder 2, %s11
    // Predicated region
    $region49: #{scale_and_shift_invariant_loss.3} parent=5 // pred_check
      %p1330 = pneg %p1329
    $region50: #{scale_and_shift_invariant_loss.3} parent=5 // pred_check_branch
      %1332 = sbr.rel (%p1330) target = $region52
    $region51: #{scale_and_shift_invariant_loss.3} parent=5 // pred_region
      %s1333 = ssub.s32 %s11, 2
      // Predicated region
      $region53: #{scale_and_shift_invariant_loss.3} parent=51 // pred_check
        %p1334 = pneg %p188
      $region54: #{scale_and_shift_invariant_loss.3} parent=51 // pred_check_branch
        %1336 = sbr.rel (%p1334) target = $region56
      $region55: #{scale_and_shift_invariant_loss.3} parent=51 // pred_region
        %p1337 = scmp.lt.s32.totalorder %s22, 1
        %s1338 = scalar_select %p1337, %s22, 1
        %s1339 = smul.addr %s1338, 8
        %s1340 = scalar_lea.vmem %s5, %s1339
      $region56: #{scale_and_shift_invariant_loss.3} parent=51 // pred_fallthru
        _
    $region52: #{scale_and_shift_invariant_loss.3} parent=5 // pred_fallthru
      _
  $region6: #{scale_and_shift_invariant_loss.3} parent=0 // loop_footer
    %s15 = sadd.s32 1, %s11
  $region7: #{scale_and_shift_invariant_loss.3} parent=0 // loop_footer_branch
    %10 = sbr.rel target = $region3
  $region8: #{scale_and_shift_invariant_loss.3} parent=0 // loop_exit
    _

</llo_original>
